<compile_context>
chip_gen: v7x
topology: tpu7x:2x2x1
jax: 0.10.0
libtpu: 0.0.40
codegen_flags: <defaults>
</compile_context>

<pallas_src>
import functools
import math

import jax
import jax.numpy as jnp
from jax import lax
from jax.experimental import pallas as pl
from jax.experimental.pallas import tpu as pltpu


def _attention_kernel(x_ref, wqkv_ref, wout_ref, bout_ref, o_ref, *, heads, scale):
    _, n, dim = x_ref.shape
    dh = dim // heads
    cdt = x_ref.dtype                                             # MXU operand dtype

    x = x_ref[0]                                                  # (n, dim)
    # QKV projection (no bias), f32 accumulation on the MXU.
    qkv = jnp.dot(x, wqkv_ref[...],
                  preferred_element_type=jnp.float32)             # (n, 3*dim) f32
    # Fold the softmax scale into q once (cheaper than scaling each (n,n) tile).
    q = (qkv[:, :dim] * scale).astype(cdt)
    k = qkv[:, dim:2 * dim].astype(cdt)
    v = qkv[:, 2 * dim:].astype(cdt)

    # Bias folded into the accumulator init; per-head outputs folded into the
    # output projection:  concat_h(o_h) @ Wout + b == b + sum_h o_h @ Wout[h*dh:(h+1)*dh, :]
    acc = jnp.broadcast_to(bout_ref[...], (n, dim)).astype(jnp.float32)
    for h in range(heads):                                        # static unroll
        lo = h * dh
        qh = q[:, lo:lo + dh]                                     # (n, dh)
        kh = k[:, lo:lo + dh]
        vh = v[:, lo:lo + dh]
        # q @ k^T without materializing a transpose; f32 accumulation.
        dots = lax.dot_general(qh, kh, (((1,), (1,)), ((), ())),
                               preferred_element_type=jnp.float32)  # (n, n) f32
        dots = dots - jnp.max(dots, axis=-1, keepdims=True)       # stable softmax
        p = jnp.exp(dots)
        p = p * pl.reciprocal(jnp.sum(p, axis=-1, keepdims=True), approx=False)
        oh = jnp.dot(p.astype(cdt), vh,
                     preferred_element_type=jnp.float32)          # (n, dh)
        w_h = wout_ref[lo:lo + dh, :]                             # (dh, dim), static slice
        acc = acc + jnp.dot(oh.astype(w_h.dtype), w_h,
                            preferred_element_type=jnp.float32)
    o_ref[0] = acc.astype(o_ref.dtype)


def attention(x, wqkv, wout, bout, *, heads=8):
    """x: (B, N, dim); wqkv: (dim, 3*dim); wout: (dim, dim); bout: (dim,).

    Weights are stored (in, out), i.e. already transposed relative to torch's
    nn.Linear (out, in) layout.
    """
    B, N, dim = x.shape
    assert dim % heads == 0, "dim must be divisible by heads"
    assert wqkv.shape == (dim, 3 * dim)
    assert wout.shape == (dim, dim)
    dh = dim // heads
    scale = dim ** (-0.5)          # reference module scales by full dim, not head dim
    bout_2d = bout.reshape(1, dim)

    kernel = functools.partial(_attention_kernel, heads=heads, scale=scale)

    itemsize = jnp.dtype(x.dtype).itemsize
    cost = pl.CostEstimate(
        flops=B * (2 * N * dim * 3 * dim          # qkv projection
                   + heads * 4 * N * N * dh       # q@k^T and attn@v
                   + 2 * N * dim * dim),          # output projection
        transcendentals=B * heads * N * N,        # exp in softmax
        bytes_accessed=(2 * x.size + wqkv.size + wout.size + bout.size) * itemsize,
    )

    out = pl.pallas_call(
        kernel,
        out_shape=jax.ShapeDtypeStruct((B, N, dim), x.dtype),
        grid_spec=pltpu.PrefetchScalarGridSpec(
            num_scalar_prefetch=0,
            grid=(B,),
            in_specs=[
                pl.BlockSpec((1, N, dim), lambda b: (b, 0, 0)),    # x tile (streams)
                pl.BlockSpec((dim, 3 * dim), lambda b: (0, 0)),    # Wqkv (resident)
                pl.BlockSpec((dim, dim), lambda b: (0, 0)),        # Wout (resident)
                pl.BlockSpec((1, dim), lambda b: (0, 0)),          # bout (resident)
            ],
            out_specs=pl.BlockSpec((1, N, dim), lambda b: (b, 0, 0)),
        ),
        compiler_params=pltpu.CompilerParams(
            dimension_semantics=("parallel",)),    # batch rows independent -> megacore
        cost_estimate=cost,
    )(x, wqkv, wout, bout_2d)
    return out


def init_params(key, dim, dtype=jnp.float32):
    """nn.Linear-style uniform(-1/sqrt(fan_in), 1/sqrt(fan_in)); weights stored (in, out)."""
    k1, k2, k3 = jax.random.split(key, 3)
    bound = 1.0 / math.sqrt(dim)
    wqkv = jax.random.uniform(k1, (dim, 3 * dim), dtype, -bound, bound)   # no bias
    wout = jax.random.uniform(k2, (dim, dim), dtype, -bound, bound)
    bout = jax.random.uniform(k3, (dim,), dtype, -bound, bound)
    return wqkv, wout, bout


if __name__ == "__main__":
    key = jax.random.PRNGKey(0)
    kx, kp = jax.random.split(key)

    batch, seq, dim, heads = 2, 8, 64, 8
    x = jax.random.normal(kx, (batch, seq, dim), dtype=jnp.float32)
    wqkv, wout, bout = init_params(kp, dim)

    out = attention(x, wqkv, wout, bout, heads=heads)
    out = jax.block_until_ready(out)

    # Plain-JAX reference of the torch forward (mask=None).
    scale = dim ** (-0.5)
    qkv = x @ wqkv
    q, k, v = jnp.split(qkv, 3, axis=-1)
    def split_heads(t):
        return t.reshape(batch, seq, heads, dim // heads).transpose(0, 2, 1, 3)
    qh, kh, vh = map(split_heads, (q, k, v))
    dots = jnp.einsum('bhid,bhjd->bhij', qh, kh) * scale
    attn = jax.nn.softmax(dots, axis=-1)
    o = jnp.einsum('bhij,bhjd->bhid', attn, vh)
    o = o.transpose(0, 2, 1, 3).reshape(batch, seq, dim)
    ref = o @ wout + bout

    assert out.shape == (batch, seq, dim)
    assert jnp.allclose(out, ref, atol=1e-4, rtol=1e-4), (
        float(jnp.max(jnp.abs(out - ref))))

    print("KERNEL_OK")
</pallas_src>

<mosaic_0001>
module attributes {stable_mosaic.version = 11 : i64} {
  func.func @_attention_kernel(%arg0: i32, %arg1: memref<1x8x64xf32, #tpu.memory_space<vmem>>, %arg2: memref<64x192xf32, #tpu.memory_space<vmem>>, %arg3: memref<64x64xf32, #tpu.memory_space<vmem>>, %arg4: memref<1x64xf32, #tpu.memory_space<vmem>>, %arg5: memref<1x8x64xf32, #tpu.memory_space<vmem>>) attributes {dimension_semantics = [#tpu.dimension_semantics<parallel>], iteration_bounds = array<i64: 2>, scalar_prefetch = 0 : i64, scratch_operands = 0 : i64, tpu.core_type = #tpu.core_type<tc>, window_params = [{transform_indices = @transform_0, window_bounds = array<i64: 1, 8, 64>}, {pipeline_mode = #tpu.pipeline_mode<synchronous>, transform_indices = @transform_1, window_bounds = array<i64: 64, 192>}, {pipeline_mode = #tpu.pipeline_mode<synchronous>, transform_indices = @transform_2, window_bounds = array<i64: 64, 64>}, {pipeline_mode = #tpu.pipeline_mode<synchronous>, transform_indices = @transform_3, window_bounds = array<i64: 1, 64>}, {transform_indices = @transform_4, window_bounds = array<i64: 1, 8, 64>}]} {
    %c0 = arith.constant 0 : index
    %c0_0 = arith.constant 0 : index
    %c0_1 = arith.constant 0 : index
    %0 = vector.load %arg1[%c0, %c0_0, %c0_1] : memref<1x8x64xf32, #tpu.memory_space<vmem>>, vector<1x8x64xf32>
    %1 = vector.shape_cast %0 : vector<1x8x64xf32> to vector<8x64xf32>
    %c0_2 = arith.constant 0 : index
    %c0_3 = arith.constant 0 : index
    %2 = vector.load %arg2[%c0_2, %c0_3] : memref<64x192xf32, #tpu.memory_space<vmem>>, vector<64x192xf32>
    %cst = arith.constant dense<0.000000e+00> : vector<8x192xf32>
    %3 = tpu.matmul %1, %2, %cst {dimension_numbers = #tpu.dot_dimension_numbers<[1], [0], [0], [1], [0, 0, 1, 1], [], []>} : vector<8x64xf32>, vector<64x192xf32>, vector<8x192xf32> -> vector<8x192xf32>
    %4 = vector.extract_strided_slice %3 {offsets = [0, 0], sizes = [8, 64], strides = [1, 1]} : vector<8x192xf32> to vector<8x64xf32>
    %cst_4 = arith.constant 1.250000e-01 : f32
    %5 = vector.broadcast %cst_4 : f32 to vector<8x64xf32>
    %6 = arith.mulf %4, %5 : vector<8x64xf32>
    %7 = vector.extract_strided_slice %3 {offsets = [0, 64], sizes = [8, 64], strides = [1, 1]} : vector<8x192xf32> to vector<8x64xf32>
    %8 = vector.extract_strided_slice %3 {offsets = [0, 128], sizes = [8, 64], strides = [1, 1]} : vector<8x192xf32> to vector<8x64xf32>
    %c0_5 = arith.constant 0 : index
    %c0_6 = arith.constant 0 : index
    %9 = vector.load %arg4[%c0_5, %c0_6] : memref<1x64xf32, #tpu.memory_space<vmem>>, vector<1x64xf32>
    %10 = vector.shape_cast %9 : vector<1x64xf32> to vector<1x64xf32>
    %11 = vector.broadcast %10 : vector<1x64xf32> to vector<8x64xf32>
    %12 = vector.extract_strided_slice %6 {offsets = [0, 0], sizes = [8, 8], strides = [1, 1]} : vector<8x64xf32> to vector<8x8xf32>
    %13 = vector.extract_strided_slice %7 {offsets = [0, 0], sizes = [8, 8], strides = [1, 1]} : vector<8x64xf32> to vector<8x8xf32>
    %14 = vector.extract_strided_slice %8 {offsets = [0, 0], sizes = [8, 8], strides = [1, 1]} : vector<8x64xf32> to vector<8x8xf32>
    %cst_7 = arith.constant dense<0.000000e+00> : vector<8x8xf32>
    %15 = tpu.matmul %12, %13, %cst_7 {dimension_numbers = #tpu.dot_dimension_numbers<[1], [1], [0], [0], [0, 0, 1, 0], [], []>} : vector<8x8xf32>, vector<8x8xf32>, vector<8x8xf32> -> vector<8x8xf32>
    %cst_8 = arith.constant dense<0xFF800000> : vector<8xf32>
    %16 = vector.multi_reduction <maximumf>, %15, %cst_8 [1] : vector<8x8xf32> to vector<8xf32>
    %17 = vector.shape_cast %16 : vector<8xf32> to vector<8x1xf32>
    %18 = vector.broadcast %17 : vector<8x1xf32> to vector<8x8xf32>
    %19 = arith.subf %15, %18 : vector<8x8xf32>
    %20 = math.exp %19 : vector<8x8xf32>
    %cst_9 = arith.constant dense<0.000000e+00> : vector<8xf32>
    %21 = vector.multi_reduction <add>, %20, %cst_9 [1] : vector<8x8xf32> to vector<8xf32>
    %22 = vector.shape_cast %21 : vector<8xf32> to vector<8x1xf32>
    %23 = tpu.reciprocal %22 : vector<8x1xf32> -> vector<8x1xf32>
    %24 = vector.broadcast %23 : vector<8x1xf32> to vector<8x8xf32>
    %25 = arith.mulf %20, %24 : vector<8x8xf32>
    %cst_10 = arith.constant dense<0.000000e+00> : vector<8x8xf32>
    %26 = tpu.matmul %25, %14, %cst_10 {dimension_numbers = #tpu.dot_dimension_numbers<[1], [0], [0], [1], [0, 0, 1, 1], [], []>} : vector<8x8xf32>, vector<8x8xf32>, vector<8x8xf32> -> vector<8x8xf32>
    %c0_11 = arith.constant 0 : index
    %c0_12 = arith.constant 0 : index
    %27 = vector.load %arg3[%c0_11, %c0_12] : memref<64x64xf32, #tpu.memory_space<vmem>>, vector<8x64xf32>
    %cst_13 = arith.constant dense<0.000000e+00> : vector<8x64xf32>
    %28 = tpu.matmul %26, %27, %cst_13 {dimension_numbers = #tpu.dot_dimension_numbers<[1], [0], [0], [1], [0, 0, 1, 1], [], []>} : vector<8x8xf32>, vector<8x64xf32>, vector<8x64xf32> -> vector<8x64xf32>
    %29 = arith.addf %11, %28 : vector<8x64xf32>
    %30 = vector.extract_strided_slice %6 {offsets = [0, 8], sizes = [8, 8], strides = [1, 1]} : vector<8x64xf32> to vector<8x8xf32>
    %31 = vector.extract_strided_slice %7 {offsets = [0, 8], sizes = [8, 8], strides = [1, 1]} : vector<8x64xf32> to vector<8x8xf32>
    %32 = vector.extract_strided_slice %8 {offsets = [0, 8], sizes = [8, 8], strides = [1, 1]} : vector<8x64xf32> to vector<8x8xf32>
    %cst_14 = arith.constant dense<0.000000e+00> : vector<8x8xf32>
    %33 = tpu.matmul %30, %31, %cst_14 {dimension_numbers = #tpu.dot_dimension_numbers<[1], [1], [0], [0], [0, 0, 1, 0], [], []>} : vector<8x8xf32>, vector<8x8xf32>, vector<8x8xf32> -> vector<8x8xf32>
    %cst_15 = arith.constant dense<0xFF800000> : vector<8xf32>
    %34 = vector.multi_reduction <maximumf>, %33, %cst_15 [1] : vector<8x8xf32> to vector<8xf32>
    %35 = vector.shape_cast %34 : vector<8xf32> to vector<8x1xf32>
    %36 = vector.broadcast %35 : vector<8x1xf32> to vector<8x8xf32>
    %37 = arith.subf %33, %36 : vector<8x8xf32>
    %38 = math.exp %37 : vector<8x8xf32>
    %cst_16 = arith.constant dense<0.000000e+00> : vector<8xf32>
    %39 = vector.multi_reduction <add>, %38, %cst_16 [1] : vector<8x8xf32> to vector<8xf32>
    %40 = vector.shape_cast %39 : vector<8xf32> to vector<8x1xf32>
    %41 = tpu.reciprocal %40 : vector<8x1xf32> -> vector<8x1xf32>
    %42 = vector.broadcast %41 : vector<8x1xf32> to vector<8x8xf32>
    %43 = arith.mulf %38, %42 : vector<8x8xf32>
    %cst_17 = arith.constant dense<0.000000e+00> : vector<8x8xf32>
    %44 = tpu.matmul %43, %32, %cst_17 {dimension_numbers = #tpu.dot_dimension_numbers<[1], [0], [0], [1], [0, 0, 1, 1], [], []>} : vector<8x8xf32>, vector<8x8xf32>, vector<8x8xf32> -> vector<8x8xf32>
    %c8 = arith.constant 8 : index
    %c0_18 = arith.constant 0 : index
    %45 = vector.load %arg3[%c8, %c0_18] : memref<64x64xf32, #tpu.memory_space<vmem>>, vector<8x64xf32>
    %cst_19 = arith.constant dense<0.000000e+00> : vector<8x64xf32>
    %46 = tpu.matmul %44, %45, %cst_19 {dimension_numbers = #tpu.dot_dimension_numbers<[1], [0], [0], [1], [0, 0, 1, 1], [], []>} : vector<8x8xf32>, vector<8x64xf32>, vector<8x64xf32> -> vector<8x64xf32>
    %47 = arith.addf %29, %46 : vector<8x64xf32>
    %48 = vector.extract_strided_slice %6 {offsets = [0, 16], sizes = [8, 8], strides = [1, 1]} : vector<8x64xf32> to vector<8x8xf32>
    %49 = vector.extract_strided_slice %7 {offsets = [0, 16], sizes = [8, 8], strides = [1, 1]} : vector<8x64xf32> to vector<8x8xf32>
    %50 = vector.extract_strided_slice %8 {offsets = [0, 16], sizes = [8, 8], strides = [1, 1]} : vector<8x64xf32> to vector<8x8xf32>
    %cst_20 = arith.constant dense<0.000000e+00> : vector<8x8xf32>
    %51 = tpu.matmul %48, %49, %cst_20 {dimension_numbers = #tpu.dot_dimension_numbers<[1], [1], [0], [0], [0, 0, 1, 0], [], []>} : vector<8x8xf32>, vector<8x8xf32>, vector<8x8xf32> -> vector<8x8xf32>
    %cst_21 = arith.constant dense<0xFF800000> : vector<8xf32>
    %52 = vector.multi_reduction <maximumf>, %51, %cst_21 [1] : vector<8x8xf32> to vector<8xf32>
    %53 = vector.shape_cast %52 : vector<8xf32> to vector<8x1xf32>
    %54 = vector.broadcast %53 : vector<8x1xf32> to vector<8x8xf32>
    %55 = arith.subf %51, %54 : vector<8x8xf32>
    %56 = math.exp %55 : vector<8x8xf32>
    %cst_22 = arith.constant dense<0.000000e+00> : vector<8xf32>
    %57 = vector.multi_reduction <add>, %56, %cst_22 [1] : vector<8x8xf32> to vector<8xf32>
    %58 = vector.shape_cast %57 : vector<8xf32> to vector<8x1xf32>
    %59 = tpu.reciprocal %58 : vector<8x1xf32> -> vector<8x1xf32>
    %60 = vector.broadcast %59 : vector<8x1xf32> to vector<8x8xf32>
    %61 = arith.mulf %56, %60 : vector<8x8xf32>
    %cst_23 = arith.constant dense<0.000000e+00> : vector<8x8xf32>
    %62 = tpu.matmul %61, %50, %cst_23 {dimension_numbers = #tpu.dot_dimension_numbers<[1], [0], [0], [1], [0, 0, 1, 1], [], []>} : vector<8x8xf32>, vector<8x8xf32>, vector<8x8xf32> -> vector<8x8xf32>
    %c16 = arith.constant 16 : index
    %c0_24 = arith.constant 0 : index
    %63 = vector.load %arg3[%c16, %c0_24] : memref<64x64xf32, #tpu.memory_space<vmem>>, vector<8x64xf32>
    %cst_25 = arith.constant dense<0.000000e+00> : vector<8x64xf32>
    %64 = tpu.matmul %62, %63, %cst_25 {dimension_numbers = #tpu.dot_dimension_numbers<[1], [0], [0], [1], [0, 0, 1, 1], [], []>} : vector<8x8xf32>, vector<8x64xf32>, vector<8x64xf32> -> vector<8x64xf32>
    %65 = arith.addf %47, %64 : vector<8x64xf32>
    %66 = vector.extract_strided_slice %6 {offsets = [0, 24], sizes = [8, 8], strides = [1, 1]} : vector<8x64xf32> to vector<8x8xf32>
    %67 = vector.extract_strided_slice %7 {offsets = [0, 24], sizes = [8, 8], strides = [1, 1]} : vector<8x64xf32> to vector<8x8xf32>
    %68 = vector.extract_strided_slice %8 {offsets = [0, 24], sizes = [8, 8], strides = [1, 1]} : vector<8x64xf32> to vector<8x8xf32>
    %cst_26 = arith.constant dense<0.000000e+00> : vector<8x8xf32>
    %69 = tpu.matmul %66, %67, %cst_26 {dimension_numbers = #tpu.dot_dimension_numbers<[1], [1], [0], [0], [0, 0, 1, 0], [], []>} : vector<8x8xf32>, vector<8x8xf32>, vector<8x8xf32> -> vector<8x8xf32>
    %cst_27 = arith.constant dense<0xFF800000> : vector<8xf32>
    %70 = vector.multi_reduction <maximumf>, %69, %cst_27 [1] : vector<8x8xf32> to vector<8xf32>
    %71 = vector.shape_cast %70 : vector<8xf32> to vector<8x1xf32>
    %72 = vector.broadcast %71 : vector<8x1xf32> to vector<8x8xf32>
    %73 = arith.subf %69, %72 : vector<8x8xf32>
    %74 = math.exp %73 : vector<8x8xf32>
    %cst_28 = arith.constant dense<0.000000e+00> : vector<8xf32>
    %75 = vector.multi_reduction <add>, %74, %cst_28 [1] : vector<8x8xf32> to vector<8xf32>
    %76 = vector.shape_cast %75 : vector<8xf32> to vector<8x1xf32>
    %77 = tpu.reciprocal %76 : vector<8x1xf32> -> vector<8x1xf32>
    %78 = vector.broadcast %77 : vector<8x1xf32> to vector<8x8xf32>
    %79 = arith.mulf %74, %78 : vector<8x8xf32>
    %cst_29 = arith.constant dense<0.000000e+00> : vector<8x8xf32>
    %80 = tpu.matmul %79, %68, %cst_29 {dimension_numbers = #tpu.dot_dimension_numbers<[1], [0], [0], [1], [0, 0, 1, 1], [], []>} : vector<8x8xf32>, vector<8x8xf32>, vector<8x8xf32> -> vector<8x8xf32>
    %c24 = arith.constant 24 : index
    %c0_30 = arith.constant 0 : index
    %81 = vector.load %arg3[%c24, %c0_30] : memref<64x64xf32, #tpu.memory_space<vmem>>, vector<8x64xf32>
    %cst_31 = arith.constant dense<0.000000e+00> : vector<8x64xf32>
    %82 = tpu.matmul %80, %81, %cst_31 {dimension_numbers = #tpu.dot_dimension_numbers<[1], [0], [0], [1], [0, 0, 1, 1], [], []>} : vector<8x8xf32>, vector<8x64xf32>, vector<8x64xf32> -> vector<8x64xf32>
    %83 = arith.addf %65, %82 : vector<8x64xf32>
    %84 = vector.extract_strided_slice %6 {offsets = [0, 32], sizes = [8, 8], strides = [1, 1]} : vector<8x64xf32> to vector<8x8xf32>
    %85 = vector.extract_strided_slice %7 {offsets = [0, 32], sizes = [8, 8], strides = [1, 1]} : vector<8x64xf32> to vector<8x8xf32>
    %86 = vector.extract_strided_slice %8 {offsets = [0, 32], sizes = [8, 8], strides = [1, 1]} : vector<8x64xf32> to vector<8x8xf32>
    %cst_32 = arith.constant dense<0.000000e+00> : vector<8x8xf32>
    %87 = tpu.matmul %84, %85, %cst_32 {dimension_numbers = #tpu.dot_dimension_numbers<[1], [1], [0], [0], [0, 0, 1, 0], [], []>} : vector<8x8xf32>, vector<8x8xf32>, vector<8x8xf32> -> vector<8x8xf32>
    %cst_33 = arith.constant dense<0xFF800000> : vector<8xf32>
    %88 = vector.multi_reduction <maximumf>, %87, %cst_33 [1] : vector<8x8xf32> to vector<8xf32>
    %89 = vector.shape_cast %88 : vector<8xf32> to vector<8x1xf32>
    %90 = vector.broadcast %89 : vector<8x1xf32> to vector<8x8xf32>
    %91 = arith.subf %87, %90 : vector<8x8xf32>
    %92 = math.exp %91 : vector<8x8xf32>
    %cst_34 = arith.constant dense<0.000000e+00> : vector<8xf32>
    %93 = vector.multi_reduction <add>, %92, %cst_34 [1] : vector<8x8xf32> to vector<8xf32>
    %94 = vector.shape_cast %93 : vector<8xf32> to vector<8x1xf32>
    %95 = tpu.reciprocal %94 : vector<8x1xf32> -> vector<8x1xf32>
    %96 = vector.broadcast %95 : vector<8x1xf32> to vector<8x8xf32>
    %97 = arith.mulf %92, %96 : vector<8x8xf32>
    %cst_35 = arith.constant dense<0.000000e+00> : vector<8x8xf32>
    %98 = tpu.matmul %97, %86, %cst_35 {dimension_numbers = #tpu.dot_dimension_numbers<[1], [0], [0], [1], [0, 0, 1, 1], [], []>} : vector<8x8xf32>, vector<8x8xf32>, vector<8x8xf32> -> vector<8x8xf32>
    %c32 = arith.constant 32 : index
    %c0_36 = arith.constant 0 : index
    %99 = vector.load %arg3[%c32, %c0_36] : memref<64x64xf32, #tpu.memory_space<vmem>>, vector<8x64xf32>
    %cst_37 = arith.constant dense<0.000000e+00> : vector<8x64xf32>
    %100 = tpu.matmul %98, %99, %cst_37 {dimension_numbers = #tpu.dot_dimension_numbers<[1], [0], [0], [1], [0, 0, 1, 1], [], []>} : vector<8x8xf32>, vector<8x64xf32>, vector<8x64xf32> -> vector<8x64xf32>
    %101 = arith.addf %83, %100 : vector<8x64xf32>
    %102 = vector.extract_strided_slice %6 {offsets = [0, 40], sizes = [8, 8], strides = [1, 1]} : vector<8x64xf32> to vector<8x8xf32>
    %103 = vector.extract_strided_slice %7 {offsets = [0, 40], sizes = [8, 8], strides = [1, 1]} : vector<8x64xf32> to vector<8x8xf32>
    %104 = vector.extract_strided_slice %8 {offsets = [0, 40], sizes = [8, 8], strides = [1, 1]} : vector<8x64xf32> to vector<8x8xf32>
    %cst_38 = arith.constant dense<0.000000e+00> : vector<8x8xf32>
    %105 = tpu.matmul %102, %103, %cst_38 {dimension_numbers = #tpu.dot_dimension_numbers<[1], [1], [0], [0], [0, 0, 1, 0], [], []>} : vector<8x8xf32>, vector<8x8xf32>, vector<8x8xf32> -> vector<8x8xf32>
    %cst_39 = arith.constant dense<0xFF800000> : vector<8xf32>
    %106 = vector.multi_reduction <maximumf>, %105, %cst_39 [1] : vector<8x8xf32> to vector<8xf32>
    %107 = vector.shape_cast %106 : vector<8xf32> to vector<8x1xf32>
    %108 = vector.broadcast %107 : vector<8x1xf32> to vector<8x8xf32>
    %109 = arith.subf %105, %108 : vector<8x8xf32>
    %110 = math.exp %109 : vector<8x8xf32>
    %cst_40 = arith.constant dense<0.000000e+00> : vector<8xf32>
    %111 = vector.multi_reduction <add>, %110, %cst_40 [1] : vector<8x8xf32> to vector<8xf32>
    %112 = vector.shape_cast %111 : vector<8xf32> to vector<8x1xf32>
    %113 = tpu.reciprocal %112 : vector<8x1xf32> -> vector<8x1xf32>
    %114 = vector.broadcast %113 : vector<8x1xf32> to vector<8x8xf32>
    %115 = arith.mulf %110, %114 : vector<8x8xf32>
    %cst_41 = arith.constant dense<0.000000e+00> : vector<8x8xf32>
    %116 = tpu.matmul %115, %104, %cst_41 {dimension_numbers = #tpu.dot_dimension_numbers<[1], [0], [0], [1], [0, 0, 1, 1], [], []>} : vector<8x8xf32>, vector<8x8xf32>, vector<8x8xf32> -> vector<8x8xf32>
    %c40 = arith.constant 40 : index
    %c0_42 = arith.constant 0 : index
    %117 = vector.load %arg3[%c40, %c0_42] : memref<64x64xf32, #tpu.memory_space<vmem>>, vector<8x64xf32>
    %cst_43 = arith.constant dense<0.000000e+00> : vector<8x64xf32>
    %118 = tpu.matmul %116, %117, %cst_43 {dimension_numbers = #tpu.dot_dimension_numbers<[1], [0], [0], [1], [0, 0, 1, 1], [], []>} : vector<8x8xf32>, vector<8x64xf32>, vector<8x64xf32> -> vector<8x64xf32>
    %119 = arith.addf %101, %118 : vector<8x64xf32>
    %120 = vector.extract_strided_slice %6 {offsets = [0, 48], sizes = [8, 8], strides = [1, 1]} : vector<8x64xf32> to vector<8x8xf32>
    %121 = vector.extract_strided_slice %7 {offsets = [0, 48], sizes = [8, 8], strides = [1, 1]} : vector<8x64xf32> to vector<8x8xf32>
    %122 = vector.extract_strided_slice %8 {offsets = [0, 48], sizes = [8, 8], strides = [1, 1]} : vector<8x64xf32> to vector<8x8xf32>
    %cst_44 = arith.constant dense<0.000000e+00> : vector<8x8xf32>
    %123 = tpu.matmul %120, %121, %cst_44 {dimension_numbers = #tpu.dot_dimension_numbers<[1], [1], [0], [0], [0, 0, 1, 0], [], []>} : vector<8x8xf32>, vector<8x8xf32>, vector<8x8xf32> -> vector<8x8xf32>
    %cst_45 = arith.constant dense<0xFF800000> : vector<8xf32>
    %124 = vector.multi_reduction <maximumf>, %123, %cst_45 [1] : vector<8x8xf32> to vector<8xf32>
    %125 = vector.shape_cast %124 : vector<8xf32> to vector<8x1xf32>
    %126 = vector.broadcast %125 : vector<8x1xf32> to vector<8x8xf32>
    %127 = arith.subf %123, %126 : vector<8x8xf32>
    %128 = math.exp %127 : vector<8x8xf32>
    %cst_46 = arith.constant dense<0.000000e+00> : vector<8xf32>
    %129 = vector.multi_reduction <add>, %128, %cst_46 [1] : vector<8x8xf32> to vector<8xf32>
    %130 = vector.shape_cast %129 : vector<8xf32> to vector<8x1xf32>
    %131 = tpu.reciprocal %130 : vector<8x1xf32> -> vector<8x1xf32>
    %132 = vector.broadcast %131 : vector<8x1xf32> to vector<8x8xf32>
    %133 = arith.mulf %128, %132 : vector<8x8xf32>
    %cst_47 = arith.constant dense<0.000000e+00> : vector<8x8xf32>
    %134 = tpu.matmul %133, %122, %cst_47 {dimension_numbers = #tpu.dot_dimension_numbers<[1], [0], [0], [1], [0, 0, 1, 1], [], []>} : vector<8x8xf32>, vector<8x8xf32>, vector<8x8xf32> -> vector<8x8xf32>
    %c48 = arith.constant 48 : index
    %c0_48 = arith.constant 0 : index
    %135 = vector.load %arg3[%c48, %c0_48] : memref<64x64xf32, #tpu.memory_space<vmem>>, vector<8x64xf32>
    %cst_49 = arith.constant dense<0.000000e+00> : vector<8x64xf32>
    %136 = tpu.matmul %134, %135, %cst_49 {dimension_numbers = #tpu.dot_dimension_numbers<[1], [0], [0], [1], [0, 0, 1, 1], [], []>} : vector<8x8xf32>, vector<8x64xf32>, vector<8x64xf32> -> vector<8x64xf32>
    %137 = arith.addf %119, %136 : vector<8x64xf32>
    %138 = vector.extract_strided_slice %6 {offsets = [0, 56], sizes = [8, 8], strides = [1, 1]} : vector<8x64xf32> to vector<8x8xf32>
    %139 = vector.extract_strided_slice %7 {offsets = [0, 56], sizes = [8, 8], strides = [1, 1]} : vector<8x64xf32> to vector<8x8xf32>
    %140 = vector.extract_strided_slice %8 {offsets = [0, 56], sizes = [8, 8], strides = [1, 1]} : vector<8x64xf32> to vector<8x8xf32>
    %cst_50 = arith.constant dense<0.000000e+00> : vector<8x8xf32>
    %141 = tpu.matmul %138, %139, %cst_50 {dimension_numbers = #tpu.dot_dimension_numbers<[1], [1], [0], [0], [0, 0, 1, 0], [], []>} : vector<8x8xf32>, vector<8x8xf32>, vector<8x8xf32> -> vector<8x8xf32>
    %cst_51 = arith.constant dense<0xFF800000> : vector<8xf32>
    %142 = vector.multi_reduction <maximumf>, %141, %cst_51 [1] : vector<8x8xf32> to vector<8xf32>
    %143 = vector.shape_cast %142 : vector<8xf32> to vector<8x1xf32>
    %144 = vector.broadcast %143 : vector<8x1xf32> to vector<8x8xf32>
    %145 = arith.subf %141, %144 : vector<8x8xf32>
    %146 = math.exp %145 : vector<8x8xf32>
    %cst_52 = arith.constant dense<0.000000e+00> : vector<8xf32>
    %147 = vector.multi_reduction <add>, %146, %cst_52 [1] : vector<8x8xf32> to vector<8xf32>
    %148 = vector.shape_cast %147 : vector<8xf32> to vector<8x1xf32>
    %149 = tpu.reciprocal %148 : vector<8x1xf32> -> vector<8x1xf32>
    %150 = vector.broadcast %149 : vector<8x1xf32> to vector<8x8xf32>
    %151 = arith.mulf %146, %150 : vector<8x8xf32>
    %cst_53 = arith.constant dense<0.000000e+00> : vector<8x8xf32>
    %152 = tpu.matmul %151, %140, %cst_53 {dimension_numbers = #tpu.dot_dimension_numbers<[1], [0], [0], [1], [0, 0, 1, 1], [], []>} : vector<8x8xf32>, vector<8x8xf32>, vector<8x8xf32> -> vector<8x8xf32>
    %c56 = arith.constant 56 : index
    %c0_54 = arith.constant 0 : index
    %153 = vector.load %arg3[%c56, %c0_54] : memref<64x64xf32, #tpu.memory_space<vmem>>, vector<8x64xf32>
    %cst_55 = arith.constant dense<0.000000e+00> : vector<8x64xf32>
    %154 = tpu.matmul %152, %153, %cst_55 {dimension_numbers = #tpu.dot_dimension_numbers<[1], [0], [0], [1], [0, 0, 1, 1], [], []>} : vector<8x8xf32>, vector<8x64xf32>, vector<8x64xf32> -> vector<8x64xf32>
    %155 = arith.addf %137, %154 : vector<8x64xf32>
    %c0_56 = arith.constant 0 : index
    %c0_57 = arith.constant 0 : index
    %c0_58 = arith.constant 0 : index
    %156 = vector.load %arg5[%c0_56, %c0_57, %c0_58] : memref<1x8x64xf32, #tpu.memory_space<vmem>>, vector<1x8x64xf32>
    %157 = vector.shape_cast %156 : vector<1x8x64xf32> to vector<8x64xf32>
    %158 = vector.shape_cast %155 : vector<8x64xf32> to vector<1x8x64xf32>
    tpu.vector_store %arg5[%c0_56, %c0_57, %c0_58], %158 {strides = array<i32>} : memref<1x8x64xf32, #tpu.memory_space<vmem>>, vector<1x8x64xf32>,
    return
  }
  func.func @transform_0(%arg0: i32) -> (i32, i32, i32) {
    %c0_i32 = arith.constant 0 : i32
    %c0_i32_0 = arith.constant 0 : i32
    %c0_i32_1 = arith.constant 0 : i32
    return %arg0, %c0_i32, %c0_i32_0 : i32, i32, i32
  }
  func.func @transform_1(%arg0: i32) -> (i32, i32) {
    %c0_i32 = arith.constant 0 : i32
    %c0_i32_0 = arith.constant 0 : i32
    %c0_i32_1 = arith.constant 0 : i32
    return %c0_i32, %c0_i32_0 : i32, i32
  }
  func.func @transform_2(%arg0: i32) -> (i32, i32) {
    %c0_i32 = arith.constant 0 : i32
    %c0_i32_0 = arith.constant 0 : i32
    %c0_i32_1 = arith.constant 0 : i32
    return %c0_i32, %c0_i32_0 : i32, i32
  }
  func.func @transform_3(%arg0: i32) -> (i32, i32) {
    %c0_i32 = arith.constant 0 : i32
    %c0_i32_0 = arith.constant 0 : i32
    %c0_i32_1 = arith.constant 0 : i32
    return %c0_i32, %c0_i32_0 : i32, i32
  }
  func.func @transform_4(%arg0: i32) -> (i32, i32, i32) {
    %c0_i32 = arith.constant 0 : i32
    %c0_i32_0 = arith.constant 0 : i32
    %c0_i32_1 = arith.constant 0 : i32
    return %arg0, %c0_i32, %c0_i32_0 : i32, i32, i32
  }
}

</mosaic_0001>

<llo_original>
// kernel: tpu_custom_call.1
$region0: #{tpu_custom_call.1}
  #allocation0 [shape = 'u32[]', space=smem, size = 0x4, offset = 0x4, fixed_abs, tag = 'smem constant byte address 0x4 - core index']
  #allocation1 [shape = 'u32[144,128]{1,0:T(1,128)}', space=vmem, size = 0x12000, scoped, tag = 'internal scratch']
  %s0 = inlined_call_operand.hbm [shape: f32[2,8,64], index: 0, kind: input, shape index: {}]
  %s1 = inlined_call_operand.hbm [shape: f32[64,192], index: 1, kind: input, shape index: {}]
  %s2 = inlined_call_operand.hbm [shape: f32[64,64], index: 2, kind: input, shape index: {}]
  %s3 = inlined_call_operand.vmem [shape: f32[1,64], index: 3, kind: input, shape index: {}]
  %s4 = inlined_call_operand.hbm [shape: f32[2,8,64], index: 4, kind: output, shape index: {}]
  %s5 = sld [smem:[#allocation0]]
  $region61: #{tpu_custom_call.1} parent=0
    _
  %s7 = ssub.s32 1, %s5
  %s8 = scalar_select 0, %s7, %s5
  $region1: #{tpu_custom_call.1} parent=0
    #allocation2 [shape = 'u8[8192]{0}', space=vmem, size = 0x2000, scoped, tag = 'input window, operand 0']
    #allocation3 [shape = 's32[2]{0}', space=sflag, size = 0x8, scoped, tag = 'scoped memory for tpu_custom_call.1']
    #allocation4 [shape = 's32[2]{0}', space=sflag, size = 0x8, scoped, tag = 'scoped memory for tpu_custom_call.1']
    #allocation5 [shape = 'u8[65536]{0}', space=vmem, size = 0x10000, scoped, tag = 'input window, operand 1, single buffered']
    #allocation6 [shape = 's32[1]{0}', space=sflag, size = 0x4, scoped, tag = 'scoped memory for tpu_custom_call.1']
    #allocation7 [shape = 'u8[32768]{0}', space=vmem, size = 0x8000, scoped, tag = 'input window, operand 2, single buffered']
    #allocation8 [shape = 'u8[8192]{0}', space=vmem, size = 0x2000, scoped, tag = 'output window, operand 0']
    %9 = vsyncpa [#allocation3], 0
    %s10 = scalar_lea.sflag [#allocation3], 1
    %11 = vsyncpa %s10, 0
    %12 = vsyncpa [#allocation6], 0
    %13 = vsyncpa [#allocation4], 0
    %s14 = scalar_lea.sflag [#allocation4], 1
    %15 = vsyncpa %s14, 0
    loop: start=0, step=1, limit=4
    $region2: #{tpu_custom_call.1} parent=1 // loop_pre_header
      _
    $region3: #{tpu_custom_call.1} parent=1 // loop_header
      %s17 = sphi 0, %s21
      %p18 = scmp.ge.s32.totalorder %s17, 4
      %s27 = sphi 0, %s29
      %s30 = sphi 0, %s27
      %s31 = sphi 0, %s30
      %s47 = sphi 0, %s31
      %s51 = sphi 0, %s51
      %s53 = sphi 0, %s51
      %s54 = sphi 0, %s53
      %s68 = sphi 0, %s54
      %s72 = sphi 0, %s72
      %s74 = sphi 0, %s72
      %s75 = sphi 0, %s74
      %s89 = sphi 0, %s75
      %s93 = sphi 0, %s93
      %s95 = sphi 0, %s93
      %s96 = sphi 0, %s95
      %s110 = sphi 0, %s96
      %s116 = sphi 0, %s118
      %s119 = sphi 0, %s116
      %s120 = sphi 0, %s119
      %s136 = sphi 0, %s120
    $region4: #{tpu_custom_call.1} parent=1 // loop_header_branch
      %20 = sbr.rel (%p18) target = $region8
    $region5: #{tpu_custom_call.1} parent=1 // loop_body
      %s22 = ssub.s32 %s17, 1
      %s23 = ssub.s32 %s17, 2
      %s24 = sadd.s32 %s17, 1
      %s25 = ssub.s32 %s17, %s24
      %p26 = scmp.eq.s32.totalorder %s25, 0
      %s28 = sadd.s32 %s27, 1
      %s29 = scalar_select %p26, %s27, %s28
      %p32 = pneg %p26
      %p33 = scmp.eq.s32.totalorder %s17, 1
      %p34 = por %p32, %p33
      %p35 = scmp.ne.s32.totalorder %s27, %s30
      %p36 = scmp.eq.s32.totalorder %s17, 0
      %p37 = por %p35, %p36
      %p38 = scmp.ne.s32.totalorder %s27, %s30
      %p39 = scmp.eq.s32.totalorder %s22, 1
      %p40 = por %p38, %p39
      %p41 = scmp.ne.s32.totalorder %s30, %s31
      %p42 = scmp.eq.s32.totalorder %s22, 0
      %p43 = por %p41, %p42
      %p44 = scmp.ne.s32.totalorder %s30, %s31
      %p45 = scmp.eq.s32.totalorder %s23, 1
      %p46 = por %p44, %p45
      %p48 = scmp.ne.s32.totalorder %s31, %s47
      %p49 = scmp.eq.s32.totalorder %s23, 0
      %p50 = por %p48, %p49
      %s52 = sadd.s32 %s51, 1
      %p55 = scmp.eq.s32.totalorder %s17, 1
      %p56 = scmp.ne.s32.totalorder %s51, %s53
      %p57 = scmp.eq.s32.totalorder %s17, 0
      %p58 = por %p56, %p57
      %p59 = scmp.ne.s32.totalorder %s51, %s53
      %p60 = scmp.eq.s32.totalorder %s22, 1
      %p61 = por %p59, %p60
      %p62 = scmp.ne.s32.totalorder %s53, %s54
      %p63 = scmp.eq.s32.totalorder %s22, 0
      %p64 = por %p62, %p63
      %p65 = scmp.ne.s32.totalorder %s53, %s54
      %p66 = scmp.eq.s32.totalorder %s23, 1
      %p67 = por %p65, %p66
      %p69 = scmp.ne.s32.totalorder %s54, %s68
      %p70 = scmp.eq.s32.totalorder %s23, 0
      %p71 = por %p69, %p70
      %s73 = sadd.s32 %s72, 1
      %p76 = scmp.eq.s32.totalorder %s17, 1
      %p77 = scmp.ne.s32.totalorder %s72, %s74
      %p78 = scmp.eq.s32.totalorder %s17, 0
      %p79 = por %p77, %p78
      %p80 = scmp.ne.s32.totalorder %s72, %s74
      %p81 = scmp.eq.s32.totalorder %s22, 1
      %p82 = por %p80, %p81
      %p83 = scmp.ne.s32.totalorder %s74, %s75
      %p84 = scmp.eq.s32.totalorder %s22, 0
      %p85 = por %p83, %p84
      %p86 = scmp.ne.s32.totalorder %s74, %s75
      %p87 = scmp.eq.s32.totalorder %s23, 1
      %p88 = por %p86, %p87
      %p90 = scmp.ne.s32.totalorder %s75, %s89
      %p91 = scmp.eq.s32.totalorder %s23, 0
      %p92 = por %p90, %p91
      %s94 = sadd.s32 %s93, 1
      %p97 = scmp.eq.s32.totalorder %s17, 1
      %p98 = scmp.ne.s32.totalorder %s93, %s95
      %p99 = scmp.eq.s32.totalorder %s17, 0
      %p100 = por %p98, %p99
      %p101 = scmp.ne.s32.totalorder %s93, %s95
      %p102 = scmp.eq.s32.totalorder %s22, 1
      %p103 = por %p101, %p102
      %p104 = scmp.ne.s32.totalorder %s95, %s96
      %p105 = scmp.eq.s32.totalorder %s22, 0
      %p106 = por %p104, %p105
      %p107 = scmp.ne.s32.totalorder %s95, %s96
      %p108 = scmp.eq.s32.totalorder %s23, 1
      %p109 = por %p107, %p108
      %p111 = scmp.ne.s32.totalorder %s96, %s110
      %p112 = scmp.eq.s32.totalorder %s23, 0
      %p113 = por %p111, %p112
      %s114 = ssub.s32 %s17, %s24
      %p115 = scmp.eq.s32.totalorder %s114, 0
      %s117 = sadd.s32 %s116, 1
      %s118 = scalar_select %p115, %s116, %s117
      %p121 = pneg %p115
      %p122 = scmp.eq.s32.totalorder %s17, 1
      %p123 = por %p121, %p122
      %p124 = scmp.ne.s32.totalorder %s116, %s119
      %p125 = scmp.eq.s32.totalorder %s17, 0
      %p126 = por %p124, %p125
      %p127 = scmp.ne.s32.totalorder %s116, %s119
      %p128 = scmp.eq.s32.totalorder %s22, 1
      %p129 = por %p127, %p128
      %p130 = scmp.ne.s32.totalorder %s119, %s120
      %p131 = scmp.eq.s32.totalorder %s22, 0
      %p132 = por %p130, %p131
      %p133 = scmp.ne.s32.totalorder %s119, %s120
      %p134 = scmp.eq.s32.totalorder %s23, 1
      %p135 = por %p133, %p134
      %p137 = scmp.ne.s32.totalorder %s120, %s136
      %p138 = scmp.eq.s32.totalorder %s23, 0
      %p139 = por %p137, %p138
      %p140 = scmp.le.s32.totalorder 1, %s17
      %p141 = scmp.lt.s32.totalorder %s17, 3
      %p142 = pnand %p140, %p141
      %p143 = pneg %p142
      // Predicated region
      $region9: #{tpu_custom_call.1} parent=5 // pred_check
        _
      $region10: #{tpu_custom_call.1} parent=5 // pred_check_branch
        %145 = sbr.rel (%p142) target = $region12
      $region11: #{tpu_custom_call.1} parent=5 // pred_region
        %s146 = ssub.s32 %s17, 1
        // Predicated region
        $region13: #{tpu_custom_call.1} parent=11 // pred_check
          %p147 = pneg %p64
        $region14: #{tpu_custom_call.1} parent=11 // pred_check_branch
          %149 = sbr.rel (%p147) target = $region16
        $region15: #{tpu_custom_call.1} parent=11 // pred_region
          %s151 = ssub.s32 2048, 2048
          %152 = vsyncadd [#allocation6], %s151
          %s153 = sshll.u32 [#allocation5], 4
          %s154 = int_to_ptr.vmem [resolvable:$true] %s153
          %159 = dma.hbm_to_vmem [thread:$0]  %s1, 2048, %s154, [#allocation6], 256, 256, 16
        $region16: #{tpu_custom_call.1} parent=11 // pred_fallthru
          _
        // Predicated region
        $region17: #{tpu_custom_call.1} parent=11 // pred_check
          %p160 = pneg %p85
        $region18: #{tpu_custom_call.1} parent=11 // pred_check_branch
          %162 = sbr.rel (%p160) target = $region20
        $region19: #{tpu_custom_call.1} parent=11 // pred_region
          %s164 = ssub.s32 1024, 1024
          %165 = vsyncadd [#allocation6], %s164
          %s166 = sshll.u32 [#allocation7], 4
          %s167 = int_to_ptr.vmem [resolvable:$true] %s166
          %172 = dma.hbm_to_vmem [thread:$0]  %s2, 1024, %s167, [#allocation6], 128, 128, 8
        $region20: #{tpu_custom_call.1} parent=11 // pred_fallthru
          _
        // Predicated region
        $region21: #{tpu_custom_call.1} parent=11 // pred_check
          %p173 = pneg %p106
        $region22: #{tpu_custom_call.1} parent=11 // pred_check_branch
          %175 = sbr.rel (%p173) target = $region24
        $region23: #{tpu_custom_call.1} parent=11 // pred_region
          _
        $region24: #{tpu_custom_call.1} parent=11 // pred_fallthru
          _
      $region12: #{tpu_custom_call.1} parent=5 // pred_fallthru
        _
      %p176 = scmp.lt.s32.totalorder %s17, 2
      // Predicated region
      $region25: #{tpu_custom_call.1} parent=5 // pred_check
        %p177 = pneg %p176
      $region26: #{tpu_custom_call.1} parent=5 // pred_check_branch
        %179 = sbr.rel (%p177) target = $region28
      $region27: #{tpu_custom_call.1} parent=5 // pred_region
        // Predicated region
        $region29: #{tpu_custom_call.1} parent=27 // pred_check
          %p180 = pneg %p37
        $region30: #{tpu_custom_call.1} parent=27 // pred_check_branch
          %182 = sbr.rel (%p180) target = $region32
        $region31: #{tpu_custom_call.1} parent=27 // pred_region
          %s183 = sand.u32 %s27, 1
          %s184 = scalar_lea.sflag [#allocation3], %s183
          %s185 = sand.u32 %s27, 1
          %s186 = smul.addr %s185, 8
          %s187 = scalar_lea.vmem [#allocation2], %s186
          %s189 = ssub.s32 128, 128
          %190 = vsyncadd %s184, %s189
          %s191 = smul.addr %s17, 128
          %s192 = scalar_lea.hbm %s0, %s191
          %s194 = sshll.u32 %s187, 4
          %s195 = int_to_ptr.vmem [resolvable:$true] %s194
          %197 = dma.hbm_to_vmem [thread:$0]  %s192, 128, %s195, %s184
        $region32: #{tpu_custom_call.1} parent=27 // pred_fallthru
          _
      $region28: #{tpu_custom_call.1} parent=5 // pred_fallthru
        _
      %p198 = scmp.le.s32.totalorder 1, %s17
      %p199 = scmp.lt.s32.totalorder %s17, 3
      %p200 = pnand %p198, %p199
      %p201 = pneg %p200
      // Predicated region
      $region33: #{tpu_custom_call.1} parent=5 // pred_check
        _
      $region34: #{tpu_custom_call.1} parent=5 // pred_check_branch
        %203 = sbr.rel (%p200) target = $region36
      $region35: #{tpu_custom_call.1} parent=5 // pred_region
        %s204 = ssub.s32 %s17, 1
        %s205 = sand.u32 %s30, 1
        %s206 = scalar_lea.sflag [#allocation3], %s205
        %s207 = sand.u32 %s30, 1
        %s208 = smul.addr %s207, 8
        %s209 = scalar_lea.vmem [#allocation2], %s208
        // Predicated region
        $region37: #{tpu_custom_call.1} parent=35 // pred_check
          %p210 = pneg %p43
        $region38: #{tpu_custom_call.1} parent=35 // pred_check_branch
          %212 = sbr.rel (%p210) target = $region40
        $region39: #{tpu_custom_call.1} parent=35 // pred_region
          %213 = dma.done %s206, 128
        $region40: #{tpu_custom_call.1} parent=35 // pred_fallthru
          _
        // Predicated region
        $region41: #{tpu_custom_call.1} parent=35 // pred_check
          %p214 = pneg %p64
        $region42: #{tpu_custom_call.1} parent=35 // pred_check_branch
          %216 = sbr.rel (%p214) target = $region44
        $region43: #{tpu_custom_call.1} parent=35 // pred_region
          %217 = dma.done [#allocation6], 2048
        $region44: #{tpu_custom_call.1} parent=35 // pred_fallthru
          _
        // Predicated region
        $region45: #{tpu_custom_call.1} parent=35 // pred_check
          %p218 = pneg %p85
        $region46: #{tpu_custom_call.1} parent=35 // pred_check_branch
          %220 = sbr.rel (%p218) target = $region48
        $region47: #{tpu_custom_call.1} parent=35 // pred_region
          %221 = dma.done [#allocation6], 1024
        $region48: #{tpu_custom_call.1} parent=35 // pred_fallthru
          _
        %s222 = sand.u32 %s30, 1
        %s223 = scalar_lea.sflag [#allocation3], %s222
        %s224 = sand.u32 %s30, 1
        %s225 = smul.addr %s224, 8
        %s226 = scalar_lea.vmem [#allocation2], %s225
        %p227 = pneg %p43
        %p228 = pneg %p40
        %p229 = pneg %p64
        %p230 = pneg %p61
        %p231 = pneg %p85
        %p232 = pneg %p82
        %p233 = pneg %p106
        %p234 = pneg %p103
        %p235 = pneg %p132
        %p236 = pneg %p129
        %s237 = sand.u32 %s119, 1
        %s238 = scalar_lea.sflag [#allocation4], %s237
        %s239 = sand.u32 %s119, 1
        %s240 = smul.addr %s239, 8
        %s241 = scalar_lea.vmem [#allocation8], %s240
        %v242 = vld [vmem:[%s209] sm:$0xff]
        %v243 = vld [vmem:[#allocation5] sm:$0xff]
        %v244 = vld [vmem:[#allocation5 + $0x8] sm:$0xff]
        %v245 = vld [vmem:[#allocation5 + $0x10] sm:$0xff]
        %v246 = vld [vmem:[#allocation5 + $0x18] sm:$0xff]
        %v247 = vld [vmem:[#allocation5 + $0x20] sm:$0xff]
        %v248 = vld [vmem:[#allocation5 + $0x28] sm:$0xff]
        %v249 = vld [vmem:[#allocation5 + $0x30] sm:$0xff]
        %v250 = vld [vmem:[#allocation5 + $0x38] sm:$0xff]
        %v251 = vld [vmem:[#allocation5 + $0x40] sm:$0xff]
        %v252 = vld [vmem:[#allocation5 + $0x48] sm:$0xff]
        %v253 = vld [vmem:[#allocation5 + $0x50] sm:$0xff]
        %v254 = vld [vmem:[#allocation5 + $0x58] sm:$0xff]
        %v255 = vld [vmem:[#allocation5 + $0x60] sm:$0xff]
        %v256 = vld [vmem:[#allocation5 + $0x68] sm:$0xff]
        %v257 = vld [vmem:[#allocation5 + $0x70] sm:$0xff]
        %v258 = vld [vmem:[#allocation5 + $0x78] sm:$0xff]
        %vm259 = vcmask 523264
        %v261 = vsel %vm259, %v242, 0
        %263 = vmatprep.subr.mxu0 %v244
        %264 = vmatpush1.msra.mxu0 %v243
        %265 = vmatprep.subr.mxu0 %v246
        %266 = vmatpush1.msra.mxu0 %v245
        %267 = vmatprep.subr.mxu0 %v248
        %268 = vmatpush1.msra.mxu0 %v247
        %269 = vmatprep.subr.mxu0 %v250
        %270 = vmatpush1.msra.mxu0 %v249
        %271 = vmatprep.subr.mxu0 %v252
        %272 = vmatpush1.msra.mxu0 %v251
        %273 = vmatprep.subr.mxu0 %v254
        %274 = vmatpush1.msra.mxu0 %v253
        %275 = vmatprep.subr.mxu0 %v256
        %276 = vmatpush1.msra.mxu0 %v255
        %277 = vmatprep.subr.mxu0 %v258
        %278 = vmatpush1.msra.mxu0 %v257
        %279 = vmatprep.subr.mxu0 0.0
        %280 = vmatpush1.msra.mxu0 0.0
        %281 = vmatprep.subr.mxu0 0.0
        %282 = vmatpush1.msra.mxu0 0.0
        %283 = vmatprep.subr.mxu0 0.0
        %284 = vmatpush1.msra.mxu0 0.0
        %285 = vmatprep.subr.mxu0 0.0
        %286 = vmatpush1.msra.mxu0 0.0
        %287 = vmatprep.subr.mxu0 0.0
        %288 = vmatpush1.msra.mxu0 0.0
        %289 = vmatprep.subr.mxu0 0.0
        %290 = vmatpush1.msra.mxu0 0.0
        %291 = vmatprep.subr.mxu0 0.0
        %292 = vmatpush1.msra.mxu0 0.0
        %293 = vmatprep.subr.mxu0 0.0
        %294 = vmatpush1.msra.mxu0 0.0
        %295 = vmatprep.subr.mxu0 0.0
        %296 = vmatpush1.msra.mxu0 0.0
        %297 = vmatprep.subr.mxu0 0.0
        %298 = vmatpush1.msra.mxu0 0.0
        %299 = vmatprep.subr.mxu0 0.0
        %300 = vmatpush1.msra.mxu0 0.0
        %301 = vmatprep.subr.mxu0 0.0
        %302 = vmatpush1.msra.mxu0 0.0
        %303 = vmatprep.subr.mxu0 0.0
        %304 = vmatpush1.msra.mxu0 0.0
        %305 = vmatprep.subr.mxu0 0.0
        %306 = vmatpush1.msra.mxu0 0.0
        %307 = vmatprep.subr.mxu0 0.0
        %308 = vmatpush1.msra.mxu0 0.0
        %309 = vmatprep.subr.mxu0 0.0
        %310 = vmatpush1.msra.mxu0 0.0
        %311 = vmatprep.subr.mxu0 0.0
        %312 = vmatpush1.msra.mxu0 0.0
        %313 = vmatprep.subr.mxu0 0.0
        %314 = vmatpush1.msra.mxu0 0.0
        %315 = vmatprep.subr.mxu0 0.0
        %316 = vmatpush1.msra.mxu0 0.0
        %317 = vmatprep.subr.mxu0 0.0
        %318 = vmatpush1.msra.mxu0 0.0
        %319 = vmatprep.subr.mxu0 0.0
        %320 = vmatpush1.msra.mxu0 0.0
        %321 = vmatprep.subr.mxu0 0.0
        %322 = vmatpush1.msra.mxu0 0.0
        %323 = vmatprep.subr.mxu0 0.0
        %324 = vmatpush1.msra.mxu0 0.0
        %325 = vmatprep.subr.mxu0 0.0
        %326 = vmatpush1.msra.mxu0 0.0
        %327 = vmatprep.mubr.f32.mxu0 0.0
        %328 = vmatmul.mubr.f32.gmra.mrb[0].mxu0 %v261
        %v329 = vpop.f32.mrb[0].mxu0
        %v330 = vadd.f32 0.0, %v329
        %v331 = vpop.f32.mrb[0].mxu0
        %v332 = vadd.f32 0.0, %v331
        %333 = vdwg.mxu0
        %v334 = vmul.f32 %v330, 0.125
        %v335 = vld [vmem:[%s3] sm:$0x1]
        %v337 = vlaneseq
        %v338 = vshrl.u32 %v337, 7
        %v339 = vsub.s32 0, %v338
        %v340 = vrot.slane %v335, %v339
        %343 = vrot.lane.b32.xlu0 %v330, 64
        %v344 = vpop.permute.xlu0 %343
        %vm345 = vcmask 64512
        %v347 = vsel %vm345, %v334, 0
        %v349 = vsel %vm345, %v344, 0
        %351 = vmatprep.subr.mxu0 0.0
        %352 = vmatpush1.xpose.msra.mxu0 %v349
        %353 = vmatprep.subr.mxu0 0.0
        %354 = vmatpush1.xpose.msra.mxu0 0.0
        %355 = vmatprep.subr.mxu0 0.0
        %356 = vmatpush1.xpose.msra.mxu0 0.0
        %357 = vmatprep.subr.mxu0 0.0
        %358 = vmatpush1.xpose.msra.mxu0 0.0
        %359 = vmatprep.subr.mxu0 0.0
        %360 = vmatpush1.xpose.msra.mxu0 0.0
        %361 = vmatprep.subr.mxu0 0.0
        %362 = vmatpush1.xpose.msra.mxu0 0.0
        %363 = vmatprep.subr.mxu0 0.0
        %364 = vmatpush1.xpose.msra.mxu0 0.0
        %365 = vmatprep.subr.mxu0 0.0
        %366 = vmatpush1.xpose.msra.mxu0 0.0
        %367 = vmatprep.subr.mxu0 0.0
        %368 = vmatpush1.xpose.msra.mxu0 0.0
        %369 = vmatprep.subr.mxu0 0.0
        %370 = vmatpush1.xpose.msra.mxu0 0.0
        %371 = vmatprep.subr.mxu0 0.0
        %372 = vmatpush1.xpose.msra.mxu0 0.0
        %373 = vmatprep.subr.mxu0 0.0
        %374 = vmatpush1.xpose.msra.mxu0 0.0
        %375 = vmatprep.subr.mxu0 0.0
        %376 = vmatpush1.xpose.msra.mxu0 0.0
        %377 = vmatprep.subr.mxu0 0.0
        %378 = vmatpush1.xpose.msra.mxu0 0.0
        %379 = vmatprep.subr.mxu0 0.0
        %380 = vmatpush1.xpose.msra.mxu0 0.0
        %381 = vmatprep.subr.mxu0 0.0
        %382 = vmatpush1.xpose.msra.mxu0 0.0
        %383 = vmatprep.subr.mxu0 0.0
        %384 = vmatpush1.xpose.msra.mxu0 0.0
        %385 = vmatprep.subr.mxu0 0.0
        %386 = vmatpush1.xpose.msra.mxu0 0.0
        %387 = vmatprep.subr.mxu0 0.0
        %388 = vmatpush1.xpose.msra.mxu0 0.0
        %389 = vmatprep.subr.mxu0 0.0
        %390 = vmatpush1.xpose.msra.mxu0 0.0
        %391 = vmatprep.subr.mxu0 0.0
        %392 = vmatpush1.xpose.msra.mxu0 0.0
        %393 = vmatprep.subr.mxu0 0.0
        %394 = vmatpush1.xpose.msra.mxu0 0.0
        %395 = vmatprep.subr.mxu0 0.0
        %396 = vmatpush1.xpose.msra.mxu0 0.0
        %397 = vmatprep.subr.mxu0 0.0
        %398 = vmatpush1.xpose.msra.mxu0 0.0
        %399 = vmatprep.subr.mxu0 0.0
        %400 = vmatpush1.xpose.msra.mxu0 0.0
        %401 = vmatprep.subr.mxu0 0.0
        %402 = vmatpush1.xpose.msra.mxu0 0.0
        %403 = vmatprep.subr.mxu0 0.0
        %404 = vmatpush1.xpose.msra.mxu0 0.0
        %405 = vmatprep.subr.mxu0 0.0
        %406 = vmatpush1.xpose.msra.mxu0 0.0
        %407 = vmatprep.subr.mxu0 0.0
        %408 = vmatpush1.xpose.msra.mxu0 0.0
        %409 = vmatprep.subr.mxu0 0.0
        %410 = vmatpush1.xpose.msra.mxu0 0.0
        %411 = vmatprep.subr.mxu0 0.0
        %412 = vmatpush1.xpose.msra.mxu0 0.0
        %413 = vmatprep.subr.mxu0 0.0
        %414 = vmatpush1.xpose.msra.mxu0 0.0
        %415 = vmatprep.mubr.f32.mxu0 0.0
        %416 = vmatmul.mubr.f32.gmra.mrb[0].mxu0 %v347
        %v417 = vpop.f32.mrb[0].mxu0
        %v418 = vadd.f32 0.0, %v417
        %v419 = vpop.f32.mrb[0].mxu0
        %420 = vdwg.mxu0
        %v421 = vsel %vm345, %v418, -inf
        %422 = vmax.xlane.f32.xlu0 %v421
        %v423 = vpop.xlane.xlu0 %422
        %v424 = vsub.f32 %v418, %v423
        %v425 = vmul.f32 %v424, 1.442695
        %v426 = vpow.pop %v425
        %v427 = vsel %vm345, %v426, 0.0
        %428 = vadd.xlane.f32.xlu0 %v427
        %v429 = vpop.xlane.xlu0 %428
        %v430 = vrcp.pop %v429
        %v431 = vmul.f32 %v426, %v430
        %v433 = vsel %vm345, %v431, 0
        %435 = vmatprep.subr.mxu0 0.0
        %436 = vmatpush1.msra.mxu0 %v332
        %437 = vmatprep.subr.mxu0 0.0
        %438 = vmatpush1.msra.mxu0 0.0
        %439 = vmatprep.subr.mxu0 0.0
        %440 = vmatpush1.msra.mxu0 0.0
        %441 = vmatprep.subr.mxu0 0.0
        %442 = vmatpush1.msra.mxu0 0.0
        %443 = vmatprep.subr.mxu0 0.0
        %444 = vmatpush1.msra.mxu0 0.0
        %445 = vmatprep.subr.mxu0 0.0
        %446 = vmatpush1.msra.mxu0 0.0
        %447 = vmatprep.subr.mxu0 0.0
        %448 = vmatpush1.msra.mxu0 0.0
        %449 = vmatprep.subr.mxu0 0.0
        %450 = vmatpush1.msra.mxu0 0.0
        %451 = vmatprep.subr.mxu0 0.0
        %452 = vmatpush1.msra.mxu0 0.0
        %453 = vmatprep.subr.mxu0 0.0
        %454 = vmatpush1.msra.mxu0 0.0
        %455 = vmatprep.subr.mxu0 0.0
        %456 = vmatpush1.msra.mxu0 0.0
        %457 = vmatprep.subr.mxu0 0.0
        %458 = vmatpush1.msra.mxu0 0.0
        %459 = vmatprep.subr.mxu0 0.0
        %460 = vmatpush1.msra.mxu0 0.0
        %461 = vmatprep.subr.mxu0 0.0
        %462 = vmatpush1.msra.mxu0 0.0
        %463 = vmatprep.subr.mxu0 0.0
        %464 = vmatpush1.msra.mxu0 0.0
        %465 = vmatprep.subr.mxu0 0.0
        %466 = vmatpush1.msra.mxu0 0.0
        %467 = vmatprep.subr.mxu0 0.0
        %468 = vmatpush1.msra.mxu0 0.0
        %469 = vmatprep.subr.mxu0 0.0
        %470 = vmatpush1.msra.mxu0 0.0
        %471 = vmatprep.subr.mxu0 0.0
        %472 = vmatpush1.msra.mxu0 0.0
        %473 = vmatprep.subr.mxu0 0.0
        %474 = vmatpush1.msra.mxu0 0.0
        %475 = vmatprep.subr.mxu0 0.0
        %476 = vmatpush1.msra.mxu0 0.0
        %477 = vmatprep.subr.mxu0 0.0
        %478 = vmatpush1.msra.mxu0 0.0
        %479 = vmatprep.subr.mxu0 0.0
        %480 = vmatpush1.msra.mxu0 0.0
        %481 = vmatprep.subr.mxu0 0.0
        %482 = vmatpush1.msra.mxu0 0.0
        %483 = vmatprep.subr.mxu0 0.0
        %484 = vmatpush1.msra.mxu0 0.0
        %485 = vmatprep.subr.mxu0 0.0
        %486 = vmatpush1.msra.mxu0 0.0
        %487 = vmatprep.subr.mxu0 0.0
        %488 = vmatpush1.msra.mxu0 0.0
        %489 = vmatprep.subr.mxu0 0.0
        %490 = vmatpush1.msra.mxu0 0.0
        %491 = vmatprep.subr.mxu0 0.0
        %492 = vmatpush1.msra.mxu0 0.0
        %493 = vmatprep.subr.mxu0 0.0
        %494 = vmatpush1.msra.mxu0 0.0
        %495 = vmatprep.subr.mxu0 0.0
        %496 = vmatpush1.msra.mxu0 0.0
        %497 = vmatprep.subr.mxu0 0.0
        %498 = vmatpush1.msra.mxu0 0.0
        %499 = vmatprep.mubr.f32.mxu0 0.0
        %500 = vmatmul.mubr.f32.gmra.mrb[0].mxu0 %v433
        %v501 = vpop.f32.mrb[0].mxu0
        %v502 = vadd.f32 0.0, %v501
        %v503 = vpop.f32.mrb[0].mxu0
        %504 = vdwg.mxu0
        %v505 = vld [vmem:[#allocation7] sm:$0xff]
        %v507 = vsel %vm345, %v502, 0
        %509 = vmatprep.subr.mxu0 0.0
        %510 = vmatpush1.msra.mxu0 %v505
        %511 = vmatprep.subr.mxu0 0.0
        %512 = vmatpush1.msra.mxu0 0.0
        %513 = vmatprep.subr.mxu0 0.0
        %514 = vmatpush1.msra.mxu0 0.0
        %515 = vmatprep.subr.mxu0 0.0
        %516 = vmatpush1.msra.mxu0 0.0
        %517 = vmatprep.subr.mxu0 0.0
        %518 = vmatpush1.msra.mxu0 0.0
        %519 = vmatprep.subr.mxu0 0.0
        %520 = vmatpush1.msra.mxu0 0.0
        %521 = vmatprep.subr.mxu0 0.0
        %522 = vmatpush1.msra.mxu0 0.0
        %523 = vmatprep.subr.mxu0 0.0
        %524 = vmatpush1.msra.mxu0 0.0
        %525 = vmatprep.subr.mxu0 0.0
        %526 = vmatpush1.msra.mxu0 0.0
        %527 = vmatprep.subr.mxu0 0.0
        %528 = vmatpush1.msra.mxu0 0.0
        %529 = vmatprep.subr.mxu0 0.0
        %530 = vmatpush1.msra.mxu0 0.0
        %531 = vmatprep.subr.mxu0 0.0
        %532 = vmatpush1.msra.mxu0 0.0
        %533 = vmatprep.subr.mxu0 0.0
        %534 = vmatpush1.msra.mxu0 0.0
        %535 = vmatprep.subr.mxu0 0.0
        %536 = vmatpush1.msra.mxu0 0.0
        %537 = vmatprep.subr.mxu0 0.0
        %538 = vmatpush1.msra.mxu0 0.0
        %539 = vmatprep.subr.mxu0 0.0
        %540 = vmatpush1.msra.mxu0 0.0
        %541 = vmatprep.subr.mxu0 0.0
        %542 = vmatpush1.msra.mxu0 0.0
        %543 = vmatprep.subr.mxu0 0.0
        %544 = vmatpush1.msra.mxu0 0.0
        %545 = vmatprep.subr.mxu0 0.0
        %546 = vmatpush1.msra.mxu0 0.0
        %547 = vmatprep.subr.mxu0 0.0
        %548 = vmatpush1.msra.mxu0 0.0
        %549 = vmatprep.subr.mxu0 0.0
        %550 = vmatpush1.msra.mxu0 0.0
        %551 = vmatprep.subr.mxu0 0.0
        %552 = vmatpush1.msra.mxu0 0.0
        %553 = vmatprep.subr.mxu0 0.0
        %554 = vmatpush1.msra.mxu0 0.0
        %555 = vmatprep.subr.mxu0 0.0
        %556 = vmatpush1.msra.mxu0 0.0
        %557 = vmatprep.subr.mxu0 0.0
        %558 = vmatpush1.msra.mxu0 0.0
        %559 = vmatprep.subr.mxu0 0.0
        %560 = vmatpush1.msra.mxu0 0.0
        %561 = vmatprep.subr.mxu0 0.0
        %562 = vmatpush1.msra.mxu0 0.0
        %563 = vmatprep.subr.mxu0 0.0
        %564 = vmatpush1.msra.mxu0 0.0
        %565 = vmatprep.subr.mxu0 0.0
        %566 = vmatpush1.msra.mxu0 0.0
        %567 = vmatprep.subr.mxu0 0.0
        %568 = vmatpush1.msra.mxu0 0.0
        %569 = vmatprep.subr.mxu0 0.0
        %570 = vmatpush1.msra.mxu0 0.0
        %571 = vmatprep.subr.mxu0 0.0
        %572 = vmatpush1.msra.mxu0 0.0
        %573 = vmatprep.mubr.f32.mxu0 0.0
        %574 = vmatmul.mubr.f32.gmra.mrb[0].mxu0 %v507
        %v575 = vpop.f32.mrb[0].mxu0
        %v576 = vadd.f32 0.0, %v575
        %v577 = vpop.f32.mrb[0].mxu0
        %578 = vdwg.mxu0
        %v579 = vadd.f32 %v340, %v576
        %580 = vrot.lane.b32.xlu0 %v334, 120
        %v581 = vpop.permute.xlu0 %580
        %582 = vrot.lane.b32.xlu0 %v330, 56
        %v583 = vpop.permute.xlu0 %582
        %v584 = vsel %vm345, %v581, 0
        %v586 = vsel %vm345, %v583, 0
        %588 = vmatprep.subr.mxu0 0.0
        %589 = vmatpush1.xpose.msra.mxu0 %v586
        %590 = vmatprep.subr.mxu0 0.0
        %591 = vmatpush1.xpose.msra.mxu0 0.0
        %592 = vmatprep.subr.mxu0 0.0
        %593 = vmatpush1.xpose.msra.mxu0 0.0
        %594 = vmatprep.subr.mxu0 0.0
        %595 = vmatpush1.xpose.msra.mxu0 0.0
        %596 = vmatprep.subr.mxu0 0.0
        %597 = vmatpush1.xpose.msra.mxu0 0.0
        %598 = vmatprep.subr.mxu0 0.0
        %599 = vmatpush1.xpose.msra.mxu0 0.0
        %600 = vmatprep.subr.mxu0 0.0
        %601 = vmatpush1.xpose.msra.mxu0 0.0
        %602 = vmatprep.subr.mxu0 0.0
        %603 = vmatpush1.xpose.msra.mxu0 0.0
        %604 = vmatprep.subr.mxu0 0.0
        %605 = vmatpush1.xpose.msra.mxu0 0.0
        %606 = vmatprep.subr.mxu0 0.0
        %607 = vmatpush1.xpose.msra.mxu0 0.0
        %608 = vmatprep.subr.mxu0 0.0
        %609 = vmatpush1.xpose.msra.mxu0 0.0
        %610 = vmatprep.subr.mxu0 0.0
        %611 = vmatpush1.xpose.msra.mxu0 0.0
        %612 = vmatprep.subr.mxu0 0.0
        %613 = vmatpush1.xpose.msra.mxu0 0.0
        %614 = vmatprep.subr.mxu0 0.0
        %615 = vmatpush1.xpose.msra.mxu0 0.0
        %616 = vmatprep.subr.mxu0 0.0
        %617 = vmatpush1.xpose.msra.mxu0 0.0
        %618 = vmatprep.subr.mxu0 0.0
        %619 = vmatpush1.xpose.msra.mxu0 0.0
        %620 = vmatprep.subr.mxu0 0.0
        %621 = vmatpush1.xpose.msra.mxu0 0.0
        %622 = vmatprep.subr.mxu0 0.0
        %623 = vmatpush1.xpose.msra.mxu0 0.0
        %624 = vmatprep.subr.mxu0 0.0
        %625 = vmatpush1.xpose.msra.mxu0 0.0
        %626 = vmatprep.subr.mxu0 0.0
        %627 = vmatpush1.xpose.msra.mxu0 0.0
        %628 = vmatprep.subr.mxu0 0.0
        %629 = vmatpush1.xpose.msra.mxu0 0.0
        %630 = vmatprep.subr.mxu0 0.0
        %631 = vmatpush1.xpose.msra.mxu0 0.0
        %632 = vmatprep.subr.mxu0 0.0
        %633 = vmatpush1.xpose.msra.mxu0 0.0
        %634 = vmatprep.subr.mxu0 0.0
        %635 = vmatpush1.xpose.msra.mxu0 0.0
        %636 = vmatprep.subr.mxu0 0.0
        %637 = vmatpush1.xpose.msra.mxu0 0.0
        %638 = vmatprep.subr.mxu0 0.0
        %639 = vmatpush1.xpose.msra.mxu0 0.0
        %640 = vmatprep.subr.mxu0 0.0
        %641 = vmatpush1.xpose.msra.mxu0 0.0
        %642 = vmatprep.subr.mxu0 0.0
        %643 = vmatpush1.xpose.msra.mxu0 0.0
        %644 = vmatprep.subr.mxu0 0.0
        %645 = vmatpush1.xpose.msra.mxu0 0.0
        %646 = vmatprep.subr.mxu0 0.0
        %647 = vmatpush1.xpose.msra.mxu0 0.0
        %648 = vmatprep.subr.mxu0 0.0
        %649 = vmatpush1.xpose.msra.mxu0 0.0
        %650 = vmatprep.subr.mxu0 0.0
        %651 = vmatpush1.xpose.msra.mxu0 0.0
        %652 = vmatprep.mubr.f32.mxu0 0.0
        %653 = vmatmul.mubr.f32.gmra.mrb[0].mxu0 %v584
        %v654 = vpop.f32.mrb[0].mxu0
        %v655 = vadd.f32 0.0, %v654
        %v656 = vpop.f32.mrb[0].mxu0
        %657 = vdwg.mxu0
        %v658 = vsel %vm345, %v655, -inf
        %659 = vmax.xlane.f32.xlu0 %v658
        %v660 = vpop.xlane.xlu0 %659
        %v661 = vsub.f32 %v655, %v660
        %v662 = vmul.f32 %v661, 1.442695
        %v663 = vpow.pop %v662
        %v664 = vsel %vm345, %v663, 0.0
        %665 = vadd.xlane.f32.xlu0 %v664
        %v666 = vpop.xlane.xlu0 %665
        %v667 = vrcp.pop %v666
        %v668 = vmul.f32 %v663, %v667
        %670 = vrot.lane.b32.xlu0 %v332, 120
        %v671 = vpop.permute.xlu0 %670
        %v674 = vsel %vm345, %v668, 0
        %676 = vmatprep.subr.mxu0 0.0
        %677 = vmatpush1.msra.mxu0 %v671
        %678 = vmatprep.subr.mxu0 0.0
        %679 = vmatpush1.msra.mxu0 0.0
        %680 = vmatprep.subr.mxu0 0.0
        %681 = vmatpush1.msra.mxu0 0.0
        %682 = vmatprep.subr.mxu0 0.0
        %683 = vmatpush1.msra.mxu0 0.0
        %684 = vmatprep.subr.mxu0 0.0
        %685 = vmatpush1.msra.mxu0 0.0
        %686 = vmatprep.subr.mxu0 0.0
        %687 = vmatpush1.msra.mxu0 0.0
        %688 = vmatprep.subr.mxu0 0.0
        %689 = vmatpush1.msra.mxu0 0.0
        %690 = vmatprep.subr.mxu0 0.0
        %691 = vmatpush1.msra.mxu0 0.0
        %692 = vmatprep.subr.mxu0 0.0
        %693 = vmatpush1.msra.mxu0 0.0
        %694 = vmatprep.subr.mxu0 0.0
        %695 = vmatpush1.msra.mxu0 0.0
        %696 = vmatprep.subr.mxu0 0.0
        %697 = vmatpush1.msra.mxu0 0.0
        %698 = vmatprep.subr.mxu0 0.0
        %699 = vmatpush1.msra.mxu0 0.0
        %700 = vmatprep.subr.mxu0 0.0
        %701 = vmatpush1.msra.mxu0 0.0
        %702 = vmatprep.subr.mxu0 0.0
        %703 = vmatpush1.msra.mxu0 0.0
        %704 = vmatprep.subr.mxu0 0.0
        %705 = vmatpush1.msra.mxu0 0.0
        %706 = vmatprep.subr.mxu0 0.0
        %707 = vmatpush1.msra.mxu0 0.0
        %708 = vmatprep.subr.mxu0 0.0
        %709 = vmatpush1.msra.mxu0 0.0
        %710 = vmatprep.subr.mxu0 0.0
        %711 = vmatpush1.msra.mxu0 0.0
        %712 = vmatprep.subr.mxu0 0.0
        %713 = vmatpush1.msra.mxu0 0.0
        %714 = vmatprep.subr.mxu0 0.0
        %715 = vmatpush1.msra.mxu0 0.0
        %716 = vmatprep.subr.mxu0 0.0
        %717 = vmatpush1.msra.mxu0 0.0
        %718 = vmatprep.subr.mxu0 0.0
        %719 = vmatpush1.msra.mxu0 0.0
        %720 = vmatprep.subr.mxu0 0.0
        %721 = vmatpush1.msra.mxu0 0.0
        %722 = vmatprep.subr.mxu0 0.0
        %723 = vmatpush1.msra.mxu0 0.0
        %724 = vmatprep.subr.mxu0 0.0
        %725 = vmatpush1.msra.mxu0 0.0
        %726 = vmatprep.subr.mxu0 0.0
        %727 = vmatpush1.msra.mxu0 0.0
        %728 = vmatprep.subr.mxu0 0.0
        %729 = vmatpush1.msra.mxu0 0.0
        %730 = vmatprep.subr.mxu0 0.0
        %731 = vmatpush1.msra.mxu0 0.0
        %732 = vmatprep.subr.mxu0 0.0
        %733 = vmatpush1.msra.mxu0 0.0
        %734 = vmatprep.subr.mxu0 0.0
        %735 = vmatpush1.msra.mxu0 0.0
        %736 = vmatprep.subr.mxu0 0.0
        %737 = vmatpush1.msra.mxu0 0.0
        %738 = vmatprep.subr.mxu0 0.0
        %739 = vmatpush1.msra.mxu0 0.0
        %740 = vmatprep.mubr.f32.mxu0 0.0
        %741 = vmatmul.mubr.f32.gmra.mrb[0].mxu0 %v674
        %v742 = vpop.f32.mrb[0].mxu0
        %v743 = vadd.f32 0.0, %v742
        %v744 = vpop.f32.mrb[0].mxu0
        %745 = vdwg.mxu0
        %v746 = vld [vmem:[#allocation7 + $0x8] sm:$0xff]
        %v748 = vsel %vm345, %v743, 0
        %750 = vmatprep.subr.mxu0 0.0
        %751 = vmatpush1.msra.mxu0 %v746
        %752 = vmatprep.subr.mxu0 0.0
        %753 = vmatpush1.msra.mxu0 0.0
        %754 = vmatprep.subr.mxu0 0.0
        %755 = vmatpush1.msra.mxu0 0.0
        %756 = vmatprep.subr.mxu0 0.0
        %757 = vmatpush1.msra.mxu0 0.0
        %758 = vmatprep.subr.mxu0 0.0
        %759 = vmatpush1.msra.mxu0 0.0
        %760 = vmatprep.subr.mxu0 0.0
        %761 = vmatpush1.msra.mxu0 0.0
        %762 = vmatprep.subr.mxu0 0.0
        %763 = vmatpush1.msra.mxu0 0.0
        %764 = vmatprep.subr.mxu0 0.0
        %765 = vmatpush1.msra.mxu0 0.0
        %766 = vmatprep.subr.mxu0 0.0
        %767 = vmatpush1.msra.mxu0 0.0
        %768 = vmatprep.subr.mxu0 0.0
        %769 = vmatpush1.msra.mxu0 0.0
        %770 = vmatprep.subr.mxu0 0.0
        %771 = vmatpush1.msra.mxu0 0.0
        %772 = vmatprep.subr.mxu0 0.0
        %773 = vmatpush1.msra.mxu0 0.0
        %774 = vmatprep.subr.mxu0 0.0
        %775 = vmatpush1.msra.mxu0 0.0
        %776 = vmatprep.subr.mxu0 0.0
        %777 = vmatpush1.msra.mxu0 0.0
        %778 = vmatprep.subr.mxu0 0.0
        %779 = vmatpush1.msra.mxu0 0.0
        %780 = vmatprep.subr.mxu0 0.0
        %781 = vmatpush1.msra.mxu0 0.0
        %782 = vmatprep.subr.mxu0 0.0
        %783 = vmatpush1.msra.mxu0 0.0
        %784 = vmatprep.subr.mxu0 0.0
        %785 = vmatpush1.msra.mxu0 0.0
        %786 = vmatprep.subr.mxu0 0.0
        %787 = vmatpush1.msra.mxu0 0.0
        %788 = vmatprep.subr.mxu0 0.0
        %789 = vmatpush1.msra.mxu0 0.0
        %790 = vmatprep.subr.mxu0 0.0
        %791 = vmatpush1.msra.mxu0 0.0
        %792 = vmatprep.subr.mxu0 0.0
        %793 = vmatpush1.msra.mxu0 0.0
        %794 = vmatprep.subr.mxu0 0.0
        %795 = vmatpush1.msra.mxu0 0.0
        %796 = vmatprep.subr.mxu0 0.0
        %797 = vmatpush1.msra.mxu0 0.0
        %798 = vmatprep.subr.mxu0 0.0
        %799 = vmatpush1.msra.mxu0 0.0
        %800 = vmatprep.subr.mxu0 0.0
        %801 = vmatpush1.msra.mxu0 0.0
        %802 = vmatprep.subr.mxu0 0.0
        %803 = vmatpush1.msra.mxu0 0.0
        %804 = vmatprep.subr.mxu0 0.0
        %805 = vmatpush1.msra.mxu0 0.0
        %806 = vmatprep.subr.mxu0 0.0
        %807 = vmatpush1.msra.mxu0 0.0
        %808 = vmatprep.subr.mxu0 0.0
        %809 = vmatpush1.msra.mxu0 0.0
        %810 = vmatprep.subr.mxu0 0.0
        %811 = vmatpush1.msra.mxu0 0.0
        %812 = vmatprep.subr.mxu0 0.0
        %813 = vmatpush1.msra.mxu0 0.0
        %814 = vmatprep.mubr.f32.mxu0 0.0
        %815 = vmatmul.mubr.f32.gmra.mrb[0].mxu0 %v748
        %v816 = vpop.f32.mrb[0].mxu0
        %v817 = vadd.f32 0.0, %v816
        %v818 = vpop.f32.mrb[0].mxu0
        %819 = vdwg.mxu0
        %v820 = vadd.f32 %v579, %v817
        %821 = vrot.lane.b32.xlu0 %v334, 112
        %v822 = vpop.permute.xlu0 %821
        %823 = vrot.lane.b32.xlu0 %v330, 48
        %v824 = vpop.permute.xlu0 %823
        %v825 = vsel %vm345, %v822, 0
        %v827 = vsel %vm345, %v824, 0
        %829 = vmatprep.subr.mxu0 0.0
        %830 = vmatpush1.xpose.msra.mxu0 %v827
        %831 = vmatprep.subr.mxu0 0.0
        %832 = vmatpush1.xpose.msra.mxu0 0.0
        %833 = vmatprep.subr.mxu0 0.0
        %834 = vmatpush1.xpose.msra.mxu0 0.0
        %835 = vmatprep.subr.mxu0 0.0
        %836 = vmatpush1.xpose.msra.mxu0 0.0
        %837 = vmatprep.subr.mxu0 0.0
        %838 = vmatpush1.xpose.msra.mxu0 0.0
        %839 = vmatprep.subr.mxu0 0.0
        %840 = vmatpush1.xpose.msra.mxu0 0.0
        %841 = vmatprep.subr.mxu0 0.0
        %842 = vmatpush1.xpose.msra.mxu0 0.0
        %843 = vmatprep.subr.mxu0 0.0
        %844 = vmatpush1.xpose.msra.mxu0 0.0
        %845 = vmatprep.subr.mxu0 0.0
        %846 = vmatpush1.xpose.msra.mxu0 0.0
        %847 = vmatprep.subr.mxu0 0.0
        %848 = vmatpush1.xpose.msra.mxu0 0.0
        %849 = vmatprep.subr.mxu0 0.0
        %850 = vmatpush1.xpose.msra.mxu0 0.0
        %851 = vmatprep.subr.mxu0 0.0
        %852 = vmatpush1.xpose.msra.mxu0 0.0
        %853 = vmatprep.subr.mxu0 0.0
        %854 = vmatpush1.xpose.msra.mxu0 0.0
        %855 = vmatprep.subr.mxu0 0.0
        %856 = vmatpush1.xpose.msra.mxu0 0.0
        %857 = vmatprep.subr.mxu0 0.0
        %858 = vmatpush1.xpose.msra.mxu0 0.0
        %859 = vmatprep.subr.mxu0 0.0
        %860 = vmatpush1.xpose.msra.mxu0 0.0
        %861 = vmatprep.subr.mxu0 0.0
        %862 = vmatpush1.xpose.msra.mxu0 0.0
        %863 = vmatprep.subr.mxu0 0.0
        %864 = vmatpush1.xpose.msra.mxu0 0.0
        %865 = vmatprep.subr.mxu0 0.0
        %866 = vmatpush1.xpose.msra.mxu0 0.0
        %867 = vmatprep.subr.mxu0 0.0
        %868 = vmatpush1.xpose.msra.mxu0 0.0
        %869 = vmatprep.subr.mxu0 0.0
        %870 = vmatpush1.xpose.msra.mxu0 0.0
        %871 = vmatprep.subr.mxu0 0.0
        %872 = vmatpush1.xpose.msra.mxu0 0.0
        %873 = vmatprep.subr.mxu0 0.0
        %874 = vmatpush1.xpose.msra.mxu0 0.0
        %875 = vmatprep.subr.mxu0 0.0
        %876 = vmatpush1.xpose.msra.mxu0 0.0
        %877 = vmatprep.subr.mxu0 0.0
        %878 = vmatpush1.xpose.msra.mxu0 0.0
        %879 = vmatprep.subr.mxu0 0.0
        %880 = vmatpush1.xpose.msra.mxu0 0.0
        %881 = vmatprep.subr.mxu0 0.0
        %882 = vmatpush1.xpose.msra.mxu0 0.0
        %883 = vmatprep.subr.mxu0 0.0
        %884 = vmatpush1.xpose.msra.mxu0 0.0
        %885 = vmatprep.subr.mxu0 0.0
        %886 = vmatpush1.xpose.msra.mxu0 0.0
        %887 = vmatprep.subr.mxu0 0.0
        %888 = vmatpush1.xpose.msra.mxu0 0.0
        %889 = vmatprep.subr.mxu0 0.0
        %890 = vmatpush1.xpose.msra.mxu0 0.0
        %891 = vmatprep.subr.mxu0 0.0
        %892 = vmatpush1.xpose.msra.mxu0 0.0
        %893 = vmatprep.mubr.f32.mxu0 0.0
        %894 = vmatmul.mubr.f32.gmra.mrb[0].mxu0 %v825
        %v895 = vpop.f32.mrb[0].mxu0
        %v896 = vadd.f32 0.0, %v895
        %v897 = vpop.f32.mrb[0].mxu0
        %898 = vdwg.mxu0
        %v899 = vsel %vm345, %v896, -inf
        %900 = vmax.xlane.f32.xlu0 %v899
        %v901 = vpop.xlane.xlu0 %900
        %v902 = vsub.f32 %v896, %v901
        %v903 = vmul.f32 %v902, 1.442695
        %v904 = vpow.pop %v903
        %v905 = vsel %vm345, %v904, 0.0
        %906 = vadd.xlane.f32.xlu0 %v905
        %v907 = vpop.xlane.xlu0 %906
        %v908 = vrcp.pop %v907
        %v909 = vmul.f32 %v904, %v908
        %910 = vrot.lane.b32.xlu0 %v332, 112
        %v911 = vpop.permute.xlu0 %910
        %v914 = vsel %vm345, %v909, 0
        %916 = vmatprep.subr.mxu0 0.0
        %917 = vmatpush1.msra.mxu0 %v911
        %918 = vmatprep.subr.mxu0 0.0
        %919 = vmatpush1.msra.mxu0 0.0
        %920 = vmatprep.subr.mxu0 0.0
        %921 = vmatpush1.msra.mxu0 0.0
        %922 = vmatprep.subr.mxu0 0.0
        %923 = vmatpush1.msra.mxu0 0.0
        %924 = vmatprep.subr.mxu0 0.0
        %925 = vmatpush1.msra.mxu0 0.0
        %926 = vmatprep.subr.mxu0 0.0
        %927 = vmatpush1.msra.mxu0 0.0
        %928 = vmatprep.subr.mxu0 0.0
        %929 = vmatpush1.msra.mxu0 0.0
        %930 = vmatprep.subr.mxu0 0.0
        %931 = vmatpush1.msra.mxu0 0.0
        %932 = vmatprep.subr.mxu0 0.0
        %933 = vmatpush1.msra.mxu0 0.0
        %934 = vmatprep.subr.mxu0 0.0
        %935 = vmatpush1.msra.mxu0 0.0
        %936 = vmatprep.subr.mxu0 0.0
        %937 = vmatpush1.msra.mxu0 0.0
        %938 = vmatprep.subr.mxu0 0.0
        %939 = vmatpush1.msra.mxu0 0.0
        %940 = vmatprep.subr.mxu0 0.0
        %941 = vmatpush1.msra.mxu0 0.0
        %942 = vmatprep.subr.mxu0 0.0
        %943 = vmatpush1.msra.mxu0 0.0
        %944 = vmatprep.subr.mxu0 0.0
        %945 = vmatpush1.msra.mxu0 0.0
        %946 = vmatprep.subr.mxu0 0.0
        %947 = vmatpush1.msra.mxu0 0.0
        %948 = vmatprep.subr.mxu0 0.0
        %949 = vmatpush1.msra.mxu0 0.0
        %950 = vmatprep.subr.mxu0 0.0
        %951 = vmatpush1.msra.mxu0 0.0
        %952 = vmatprep.subr.mxu0 0.0
        %953 = vmatpush1.msra.mxu0 0.0
        %954 = vmatprep.subr.mxu0 0.0
        %955 = vmatpush1.msra.mxu0 0.0
        %956 = vmatprep.subr.mxu0 0.0
        %957 = vmatpush1.msra.mxu0 0.0
        %958 = vmatprep.subr.mxu0 0.0
        %959 = vmatpush1.msra.mxu0 0.0
        %960 = vmatprep.subr.mxu0 0.0
        %961 = vmatpush1.msra.mxu0 0.0
        %962 = vmatprep.subr.mxu0 0.0
        %963 = vmatpush1.msra.mxu0 0.0
        %964 = vmatprep.subr.mxu0 0.0
        %965 = vmatpush1.msra.mxu0 0.0
        %966 = vmatprep.subr.mxu0 0.0
        %967 = vmatpush1.msra.mxu0 0.0
        %968 = vmatprep.subr.mxu0 0.0
        %969 = vmatpush1.msra.mxu0 0.0
        %970 = vmatprep.subr.mxu0 0.0
        %971 = vmatpush1.msra.mxu0 0.0
        %972 = vmatprep.subr.mxu0 0.0
        %973 = vmatpush1.msra.mxu0 0.0
        %974 = vmatprep.subr.mxu0 0.0
        %975 = vmatpush1.msra.mxu0 0.0
        %976 = vmatprep.subr.mxu0 0.0
        %977 = vmatpush1.msra.mxu0 0.0
        %978 = vmatprep.subr.mxu0 0.0
        %979 = vmatpush1.msra.mxu0 0.0
        %980 = vmatprep.mubr.f32.mxu0 0.0
        %981 = vmatmul.mubr.f32.gmra.mrb[0].mxu0 %v914
        %v982 = vpop.f32.mrb[0].mxu0
        %v983 = vadd.f32 0.0, %v982
        %v984 = vpop.f32.mrb[0].mxu0
        %985 = vdwg.mxu0
        %v986 = vld [vmem:[#allocation7 + $0x10] sm:$0xff]
        %v988 = vsel %vm345, %v983, 0
        %990 = vmatprep.subr.mxu0 0.0
        %991 = vmatpush1.msra.mxu0 %v986
        %992 = vmatprep.subr.mxu0 0.0
        %993 = vmatpush1.msra.mxu0 0.0
        %994 = vmatprep.subr.mxu0 0.0
        %995 = vmatpush1.msra.mxu0 0.0
        %996 = vmatprep.subr.mxu0 0.0
        %997 = vmatpush1.msra.mxu0 0.0
        %998 = vmatprep.subr.mxu0 0.0
        %999 = vmatpush1.msra.mxu0 0.0
        %1000 = vmatprep.subr.mxu0 0.0
        %1001 = vmatpush1.msra.mxu0 0.0
        %1002 = vmatprep.subr.mxu0 0.0
        %1003 = vmatpush1.msra.mxu0 0.0
        %1004 = vmatprep.subr.mxu0 0.0
        %1005 = vmatpush1.msra.mxu0 0.0
        %1006 = vmatprep.subr.mxu0 0.0
        %1007 = vmatpush1.msra.mxu0 0.0
        %1008 = vmatprep.subr.mxu0 0.0
        %1009 = vmatpush1.msra.mxu0 0.0
        %1010 = vmatprep.subr.mxu0 0.0
        %1011 = vmatpush1.msra.mxu0 0.0
        %1012 = vmatprep.subr.mxu0 0.0
        %1013 = vmatpush1.msra.mxu0 0.0
        %1014 = vmatprep.subr.mxu0 0.0
        %1015 = vmatpush1.msra.mxu0 0.0
        %1016 = vmatprep.subr.mxu0 0.0
        %1017 = vmatpush1.msra.mxu0 0.0
        %1018 = vmatprep.subr.mxu0 0.0
        %1019 = vmatpush1.msra.mxu0 0.0
        %1020 = vmatprep.subr.mxu0 0.0
        %1021 = vmatpush1.msra.mxu0 0.0
        %1022 = vmatprep.subr.mxu0 0.0
        %1023 = vmatpush1.msra.mxu0 0.0
        %1024 = vmatprep.subr.mxu0 0.0
        %1025 = vmatpush1.msra.mxu0 0.0
        %1026 = vmatprep.subr.mxu0 0.0
        %1027 = vmatpush1.msra.mxu0 0.0
        %1028 = vmatprep.subr.mxu0 0.0
        %1029 = vmatpush1.msra.mxu0 0.0
        %1030 = vmatprep.subr.mxu0 0.0
        %1031 = vmatpush1.msra.mxu0 0.0
        %1032 = vmatprep.subr.mxu0 0.0
        %1033 = vmatpush1.msra.mxu0 0.0
        %1034 = vmatprep.subr.mxu0 0.0
        %1035 = vmatpush1.msra.mxu0 0.0
        %1036 = vmatprep.subr.mxu0 0.0
        %1037 = vmatpush1.msra.mxu0 0.0
        %1038 = vmatprep.subr.mxu0 0.0
        %1039 = vmatpush1.msra.mxu0 0.0
        %1040 = vmatprep.subr.mxu0 0.0
        %1041 = vmatpush1.msra.mxu0 0.0
        %1042 = vmatprep.subr.mxu0 0.0
        %1043 = vmatpush1.msra.mxu0 0.0
        %1044 = vmatprep.subr.mxu0 0.0
        %1045 = vmatpush1.msra.mxu0 0.0
        %1046 = vmatprep.subr.mxu0 0.0
        %1047 = vmatpush1.msra.mxu0 0.0
        %1048 = vmatprep.subr.mxu0 0.0
        %1049 = vmatpush1.msra.mxu0 0.0
        %1050 = vmatprep.subr.mxu0 0.0
        %1051 = vmatpush1.msra.mxu0 0.0
        %1052 = vmatprep.subr.mxu0 0.0
        %1053 = vmatpush1.msra.mxu0 0.0
        %1054 = vmatprep.mubr.f32.mxu0 0.0
        %1055 = vmatmul.mubr.f32.gmra.mrb[0].mxu0 %v988
        %v1056 = vpop.f32.mrb[0].mxu0
        %v1057 = vadd.f32 0.0, %v1056
        %v1058 = vpop.f32.mrb[0].mxu0
        %1059 = vdwg.mxu0
        %v1060 = vadd.f32 %v820, %v1057
        %1061 = vrot.lane.b32.xlu0 %v334, 104
        %v1062 = vpop.permute.xlu0 %1061
        %1063 = vrot.lane.b32.xlu0 %v330, 40
        %v1064 = vpop.permute.xlu0 %1063
        %v1065 = vsel %vm345, %v1062, 0
        %v1067 = vsel %vm345, %v1064, 0
        %1069 = vmatprep.subr.mxu0 0.0
        %1070 = vmatpush1.xpose.msra.mxu0 %v1067
        %1071 = vmatprep.subr.mxu0 0.0
        %1072 = vmatpush1.xpose.msra.mxu0 0.0
        %1073 = vmatprep.subr.mxu0 0.0
        %1074 = vmatpush1.xpose.msra.mxu0 0.0
        %1075 = vmatprep.subr.mxu0 0.0
        %1076 = vmatpush1.xpose.msra.mxu0 0.0
        %1077 = vmatprep.subr.mxu0 0.0
        %1078 = vmatpush1.xpose.msra.mxu0 0.0
        %1079 = vmatprep.subr.mxu0 0.0
        %1080 = vmatpush1.xpose.msra.mxu0 0.0
        %1081 = vmatprep.subr.mxu0 0.0
        %1082 = vmatpush1.xpose.msra.mxu0 0.0
        %1083 = vmatprep.subr.mxu0 0.0
        %1084 = vmatpush1.xpose.msra.mxu0 0.0
        %1085 = vmatprep.subr.mxu0 0.0
        %1086 = vmatpush1.xpose.msra.mxu0 0.0
        %1087 = vmatprep.subr.mxu0 0.0
        %1088 = vmatpush1.xpose.msra.mxu0 0.0
        %1089 = vmatprep.subr.mxu0 0.0
        %1090 = vmatpush1.xpose.msra.mxu0 0.0
        %1091 = vmatprep.subr.mxu0 0.0
        %1092 = vmatpush1.xpose.msra.mxu0 0.0
        %1093 = vmatprep.subr.mxu0 0.0
        %1094 = vmatpush1.xpose.msra.mxu0 0.0
        %1095 = vmatprep.subr.mxu0 0.0
        %1096 = vmatpush1.xpose.msra.mxu0 0.0
        %1097 = vmatprep.subr.mxu0 0.0
        %1098 = vmatpush1.xpose.msra.mxu0 0.0
        %1099 = vmatprep.subr.mxu0 0.0
        %1100 = vmatpush1.xpose.msra.mxu0 0.0
        %1101 = vmatprep.subr.mxu0 0.0
        %1102 = vmatpush1.xpose.msra.mxu0 0.0
        %1103 = vmatprep.subr.mxu0 0.0
        %1104 = vmatpush1.xpose.msra.mxu0 0.0
        %1105 = vmatprep.subr.mxu0 0.0
        %1106 = vmatpush1.xpose.msra.mxu0 0.0
        %1107 = vmatprep.subr.mxu0 0.0
        %1108 = vmatpush1.xpose.msra.mxu0 0.0
        %1109 = vmatprep.subr.mxu0 0.0
        %1110 = vmatpush1.xpose.msra.mxu0 0.0
        %1111 = vmatprep.subr.mxu0 0.0
        %1112 = vmatpush1.xpose.msra.mxu0 0.0
        %1113 = vmatprep.subr.mxu0 0.0
        %1114 = vmatpush1.xpose.msra.mxu0 0.0
        %1115 = vmatprep.subr.mxu0 0.0
        %1116 = vmatpush1.xpose.msra.mxu0 0.0
        %1117 = vmatprep.subr.mxu0 0.0
        %1118 = vmatpush1.xpose.msra.mxu0 0.0
        %1119 = vmatprep.subr.mxu0 0.0
        %1120 = vmatpush1.xpose.msra.mxu0 0.0
        %1121 = vmatprep.subr.mxu0 0.0
        %1122 = vmatpush1.xpose.msra.mxu0 0.0
        %1123 = vmatprep.subr.mxu0 0.0
        %1124 = vmatpush1.xpose.msra.mxu0 0.0
        %1125 = vmatprep.subr.mxu0 0.0
        %1126 = vmatpush1.xpose.msra.mxu0 0.0
        %1127 = vmatprep.subr.mxu0 0.0
        %1128 = vmatpush1.xpose.msra.mxu0 0.0
        %1129 = vmatprep.subr.mxu0 0.0
        %1130 = vmatpush1.xpose.msra.mxu0 0.0
        %1131 = vmatprep.subr.mxu0 0.0
        %1132 = vmatpush1.xpose.msra.mxu0 0.0
        %1133 = vmatprep.mubr.f32.mxu0 0.0
        %1134 = vmatmul.mubr.f32.gmra.mrb[0].mxu0 %v1065
        %v1135 = vpop.f32.mrb[0].mxu0
        %v1136 = vadd.f32 0.0, %v1135
        %v1137 = vpop.f32.mrb[0].mxu0
        %1138 = vdwg.mxu0
        %v1139 = vsel %vm345, %v1136, -inf
        %1140 = vmax.xlane.f32.xlu0 %v1139
        %v1141 = vpop.xlane.xlu0 %1140
        %v1142 = vsub.f32 %v1136, %v1141
        %v1143 = vmul.f32 %v1142, 1.442695
        %v1144 = vpow.pop %v1143
        %v1145 = vsel %vm345, %v1144, 0.0
        %1146 = vadd.xlane.f32.xlu0 %v1145
        %v1147 = vpop.xlane.xlu0 %1146
        %v1148 = vrcp.pop %v1147
        %v1149 = vmul.f32 %v1144, %v1148
        %1150 = vrot.lane.b32.xlu0 %v332, 104
        %v1151 = vpop.permute.xlu0 %1150
        %v1154 = vsel %vm345, %v1149, 0
        %1156 = vmatprep.subr.mxu0 0.0
        %1157 = vmatpush1.msra.mxu0 %v1151
        %1158 = vmatprep.subr.mxu0 0.0
        %1159 = vmatpush1.msra.mxu0 0.0
        %1160 = vmatprep.subr.mxu0 0.0
        %1161 = vmatpush1.msra.mxu0 0.0
        %1162 = vmatprep.subr.mxu0 0.0
        %1163 = vmatpush1.msra.mxu0 0.0
        %1164 = vmatprep.subr.mxu0 0.0
        %1165 = vmatpush1.msra.mxu0 0.0
        %1166 = vmatprep.subr.mxu0 0.0
        %1167 = vmatpush1.msra.mxu0 0.0
        %1168 = vmatprep.subr.mxu0 0.0
        %1169 = vmatpush1.msra.mxu0 0.0
        %1170 = vmatprep.subr.mxu0 0.0
        %1171 = vmatpush1.msra.mxu0 0.0
        %1172 = vmatprep.subr.mxu0 0.0
        %1173 = vmatpush1.msra.mxu0 0.0
        %1174 = vmatprep.subr.mxu0 0.0
        %1175 = vmatpush1.msra.mxu0 0.0
        %1176 = vmatprep.subr.mxu0 0.0
        %1177 = vmatpush1.msra.mxu0 0.0
        %1178 = vmatprep.subr.mxu0 0.0
        %1179 = vmatpush1.msra.mxu0 0.0
        %1180 = vmatprep.subr.mxu0 0.0
        %1181 = vmatpush1.msra.mxu0 0.0
        %1182 = vmatprep.subr.mxu0 0.0
        %1183 = vmatpush1.msra.mxu0 0.0
        %1184 = vmatprep.subr.mxu0 0.0
        %1185 = vmatpush1.msra.mxu0 0.0
        %1186 = vmatprep.subr.mxu0 0.0
        %1187 = vmatpush1.msra.mxu0 0.0
        %1188 = vmatprep.subr.mxu0 0.0
        %1189 = vmatpush1.msra.mxu0 0.0
        %1190 = vmatprep.subr.mxu0 0.0
        %1191 = vmatpush1.msra.mxu0 0.0
        %1192 = vmatprep.subr.mxu0 0.0
        %1193 = vmatpush1.msra.mxu0 0.0
        %1194 = vmatprep.subr.mxu0 0.0
        %1195 = vmatpush1.msra.mxu0 0.0
        %1196 = vmatprep.subr.mxu0 0.0
        %1197 = vmatpush1.msra.mxu0 0.0
        %1198 = vmatprep.subr.mxu0 0.0
        %1199 = vmatpush1.msra.mxu0 0.0
        %1200 = vmatprep.subr.mxu0 0.0
        %1201 = vmatpush1.msra.mxu0 0.0
        %1202 = vmatprep.subr.mxu0 0.0
        %1203 = vmatpush1.msra.mxu0 0.0
        %1204 = vmatprep.subr.mxu0 0.0
        %1205 = vmatpush1.msra.mxu0 0.0
        %1206 = vmatprep.subr.mxu0 0.0
        %1207 = vmatpush1.msra.mxu0 0.0
        %1208 = vmatprep.subr.mxu0 0.0
        %1209 = vmatpush1.msra.mxu0 0.0
        %1210 = vmatprep.subr.mxu0 0.0
        %1211 = vmatpush1.msra.mxu0 0.0
        %1212 = vmatprep.subr.mxu0 0.0
        %1213 = vmatpush1.msra.mxu0 0.0
        %1214 = vmatprep.subr.mxu0 0.0
        %1215 = vmatpush1.msra.mxu0 0.0
        %1216 = vmatprep.subr.mxu0 0.0
        %1217 = vmatpush1.msra.mxu0 0.0
        %1218 = vmatprep.subr.mxu0 0.0
        %1219 = vmatpush1.msra.mxu0 0.0
        %1220 = vmatprep.mubr.f32.mxu0 0.0
        %1221 = vmatmul.mubr.f32.gmra.mrb[0].mxu0 %v1154
        %v1222 = vpop.f32.mrb[0].mxu0
        %v1223 = vadd.f32 0.0, %v1222
        %v1224 = vpop.f32.mrb[0].mxu0
        %1225 = vdwg.mxu0
        %v1226 = vld [vmem:[#allocation7 + $0x18] sm:$0xff]
        %v1228 = vsel %vm345, %v1223, 0
        %1230 = vmatprep.subr.mxu0 0.0
        %1231 = vmatpush1.msra.mxu0 %v1226
        %1232 = vmatprep.subr.mxu0 0.0
        %1233 = vmatpush1.msra.mxu0 0.0
        %1234 = vmatprep.subr.mxu0 0.0
        %1235 = vmatpush1.msra.mxu0 0.0
        %1236 = vmatprep.subr.mxu0 0.0
        %1237 = vmatpush1.msra.mxu0 0.0
        %1238 = vmatprep.subr.mxu0 0.0
        %1239 = vmatpush1.msra.mxu0 0.0
        %1240 = vmatprep.subr.mxu0 0.0
        %1241 = vmatpush1.msra.mxu0 0.0
        %1242 = vmatprep.subr.mxu0 0.0
        %1243 = vmatpush1.msra.mxu0 0.0
        %1244 = vmatprep.subr.mxu0 0.0
        %1245 = vmatpush1.msra.mxu0 0.0
        %1246 = vmatprep.subr.mxu0 0.0
        %1247 = vmatpush1.msra.mxu0 0.0
        %1248 = vmatprep.subr.mxu0 0.0
        %1249 = vmatpush1.msra.mxu0 0.0
        %1250 = vmatprep.subr.mxu0 0.0
        %1251 = vmatpush1.msra.mxu0 0.0
        %1252 = vmatprep.subr.mxu0 0.0
        %1253 = vmatpush1.msra.mxu0 0.0
        %1254 = vmatprep.subr.mxu0 0.0
        %1255 = vmatpush1.msra.mxu0 0.0
        %1256 = vmatprep.subr.mxu0 0.0
        %1257 = vmatpush1.msra.mxu0 0.0
        %1258 = vmatprep.subr.mxu0 0.0
        %1259 = vmatpush1.msra.mxu0 0.0
        %1260 = vmatprep.subr.mxu0 0.0
        %1261 = vmatpush1.msra.mxu0 0.0
        %1262 = vmatprep.subr.mxu0 0.0
        %1263 = vmatpush1.msra.mxu0 0.0
        %1264 = vmatprep.subr.mxu0 0.0
        %1265 = vmatpush1.msra.mxu0 0.0
        %1266 = vmatprep.subr.mxu0 0.0
        %1267 = vmatpush1.msra.mxu0 0.0
        %1268 = vmatprep.subr.mxu0 0.0
        %1269 = vmatpush1.msra.mxu0 0.0
        %1270 = vmatprep.subr.mxu0 0.0
        %1271 = vmatpush1.msra.mxu0 0.0
        %1272 = vmatprep.subr.mxu0 0.0
        %1273 = vmatpush1.msra.mxu0 0.0
        %1274 = vmatprep.subr.mxu0 0.0
        %1275 = vmatpush1.msra.mxu0 0.0
        %1276 = vmatprep.subr.mxu0 0.0
        %1277 = vmatpush1.msra.mxu0 0.0
        %1278 = vmatprep.subr.mxu0 0.0
        %1279 = vmatpush1.msra.mxu0 0.0
        %1280 = vmatprep.subr.mxu0 0.0
        %1281 = vmatpush1.msra.mxu0 0.0
        %1282 = vmatprep.subr.mxu0 0.0
        %1283 = vmatpush1.msra.mxu0 0.0
        %1284 = vmatprep.subr.mxu0 0.0
        %1285 = vmatpush1.msra.mxu0 0.0
        %1286 = vmatprep.subr.mxu0 0.0
        %1287 = vmatpush1.msra.mxu0 0.0
        %1288 = vmatprep.subr.mxu0 0.0
        %1289 = vmatpush1.msra.mxu0 0.0
        %1290 = vmatprep.subr.mxu0 0.0
        %1291 = vmatpush1.msra.mxu0 0.0
        %1292 = vmatprep.subr.mxu0 0.0
        %1293 = vmatpush1.msra.mxu0 0.0
        %1294 = vmatprep.mubr.f32.mxu0 0.0
        %1295 = vmatmul.mubr.f32.gmra.mrb[0].mxu0 %v1228
        %v1296 = vpop.f32.mrb[0].mxu0
        %v1297 = vadd.f32 0.0, %v1296
        %v1298 = vpop.f32.mrb[0].mxu0
        %1299 = vdwg.mxu0
        %v1300 = vadd.f32 %v1060, %v1297
        %1301 = vrot.lane.b32.xlu0 %v334, 96
        %v1302 = vpop.permute.xlu0 %1301
        %1303 = vrot.lane.b32.xlu0 %v330, 32
        %v1304 = vpop.permute.xlu0 %1303
        %v1305 = vsel %vm345, %v1302, 0
        %v1307 = vsel %vm345, %v1304, 0
        %1309 = vmatprep.subr.mxu0 0.0
        %1310 = vmatpush1.xpose.msra.mxu0 %v1307
        %1311 = vmatprep.subr.mxu0 0.0
        %1312 = vmatpush1.xpose.msra.mxu0 0.0
        %1313 = vmatprep.subr.mxu0 0.0
        %1314 = vmatpush1.xpose.msra.mxu0 0.0
        %1315 = vmatprep.subr.mxu0 0.0
        %1316 = vmatpush1.xpose.msra.mxu0 0.0
        %1317 = vmatprep.subr.mxu0 0.0
        %1318 = vmatpush1.xpose.msra.mxu0 0.0
        %1319 = vmatprep.subr.mxu0 0.0
        %1320 = vmatpush1.xpose.msra.mxu0 0.0
        %1321 = vmatprep.subr.mxu0 0.0
        %1322 = vmatpush1.xpose.msra.mxu0 0.0
        %1323 = vmatprep.subr.mxu0 0.0
        %1324 = vmatpush1.xpose.msra.mxu0 0.0
        %1325 = vmatprep.subr.mxu0 0.0
        %1326 = vmatpush1.xpose.msra.mxu0 0.0
        %1327 = vmatprep.subr.mxu0 0.0
        %1328 = vmatpush1.xpose.msra.mxu0 0.0
        %1329 = vmatprep.subr.mxu0 0.0
        %1330 = vmatpush1.xpose.msra.mxu0 0.0
        %1331 = vmatprep.subr.mxu0 0.0
        %1332 = vmatpush1.xpose.msra.mxu0 0.0
        %1333 = vmatprep.subr.mxu0 0.0
        %1334 = vmatpush1.xpose.msra.mxu0 0.0
        %1335 = vmatprep.subr.mxu0 0.0
        %1336 = vmatpush1.xpose.msra.mxu0 0.0
        %1337 = vmatprep.subr.mxu0 0.0
        %1338 = vmatpush1.xpose.msra.mxu0 0.0
        %1339 = vmatprep.subr.mxu0 0.0
        %1340 = vmatpush1.xpose.msra.mxu0 0.0
        %1341 = vmatprep.subr.mxu0 0.0
        %1342 = vmatpush1.xpose.msra.mxu0 0.0
        %1343 = vmatprep.subr.mxu0 0.0
        %1344 = vmatpush1.xpose.msra.mxu0 0.0
        %1345 = vmatprep.subr.mxu0 0.0
        %1346 = vmatpush1.xpose.msra.mxu0 0.0
        %1347 = vmatprep.subr.mxu0 0.0
        %1348 = vmatpush1.xpose.msra.mxu0 0.0
        %1349 = vmatprep.subr.mxu0 0.0
        %1350 = vmatpush1.xpose.msra.mxu0 0.0
        %1351 = vmatprep.subr.mxu0 0.0
        %1352 = vmatpush1.xpose.msra.mxu0 0.0
        %1353 = vmatprep.subr.mxu0 0.0
        %1354 = vmatpush1.xpose.msra.mxu0 0.0
        %1355 = vmatprep.subr.mxu0 0.0
        %1356 = vmatpush1.xpose.msra.mxu0 0.0
        %1357 = vmatprep.subr.mxu0 0.0
        %1358 = vmatpush1.xpose.msra.mxu0 0.0
        %1359 = vmatprep.subr.mxu0 0.0
        %1360 = vmatpush1.xpose.msra.mxu0 0.0
        %1361 = vmatprep.subr.mxu0 0.0
        %1362 = vmatpush1.xpose.msra.mxu0 0.0
        %1363 = vmatprep.subr.mxu0 0.0
        %1364 = vmatpush1.xpose.msra.mxu0 0.0
        %1365 = vmatprep.subr.mxu0 0.0
        %1366 = vmatpush1.xpose.msra.mxu0 0.0
        %1367 = vmatprep.subr.mxu0 0.0
        %1368 = vmatpush1.xpose.msra.mxu0 0.0
        %1369 = vmatprep.subr.mxu0 0.0
        %1370 = vmatpush1.xpose.msra.mxu0 0.0
        %1371 = vmatprep.subr.mxu0 0.0
        %1372 = vmatpush1.xpose.msra.mxu0 0.0
        %1373 = vmatprep.mubr.f32.mxu0 0.0
        %1374 = vmatmul.mubr.f32.gmra.mrb[0].mxu0 %v1305
        %v1375 = vpop.f32.mrb[0].mxu0
        %v1376 = vadd.f32 0.0, %v1375
        %v1377 = vpop.f32.mrb[0].mxu0
        %1378 = vdwg.mxu0
        %v1379 = vsel %vm345, %v1376, -inf
        %1380 = vmax.xlane.f32.xlu0 %v1379
        %v1381 = vpop.xlane.xlu0 %1380
        %v1382 = vsub.f32 %v1376, %v1381
        %v1383 = vmul.f32 %v1382, 1.442695
        %v1384 = vpow.pop %v1383
        %v1385 = vsel %vm345, %v1384, 0.0
        %1386 = vadd.xlane.f32.xlu0 %v1385
        %v1387 = vpop.xlane.xlu0 %1386
        %v1388 = vrcp.pop %v1387
        %v1389 = vmul.f32 %v1384, %v1388
        %1390 = vrot.lane.b32.xlu0 %v332, 96
        %v1391 = vpop.permute.xlu0 %1390
        %v1394 = vsel %vm345, %v1389, 0
        %1396 = vmatprep.subr.mxu0 0.0
        %1397 = vmatpush1.msra.mxu0 %v1391
        %1398 = vmatprep.subr.mxu0 0.0
        %1399 = vmatpush1.msra.mxu0 0.0
        %1400 = vmatprep.subr.mxu0 0.0
        %1401 = vmatpush1.msra.mxu0 0.0
        %1402 = vmatprep.subr.mxu0 0.0
        %1403 = vmatpush1.msra.mxu0 0.0
        %1404 = vmatprep.subr.mxu0 0.0
        %1405 = vmatpush1.msra.mxu0 0.0
        %1406 = vmatprep.subr.mxu0 0.0
        %1407 = vmatpush1.msra.mxu0 0.0
        %1408 = vmatprep.subr.mxu0 0.0
        %1409 = vmatpush1.msra.mxu0 0.0
        %1410 = vmatprep.subr.mxu0 0.0
        %1411 = vmatpush1.msra.mxu0 0.0
        %1412 = vmatprep.subr.mxu0 0.0
        %1413 = vmatpush1.msra.mxu0 0.0
        %1414 = vmatprep.subr.mxu0 0.0
        %1415 = vmatpush1.msra.mxu0 0.0
        %1416 = vmatprep.subr.mxu0 0.0
        %1417 = vmatpush1.msra.mxu0 0.0
        %1418 = vmatprep.subr.mxu0 0.0
        %1419 = vmatpush1.msra.mxu0 0.0
        %1420 = vmatprep.subr.mxu0 0.0
        %1421 = vmatpush1.msra.mxu0 0.0
        %1422 = vmatprep.subr.mxu0 0.0
        %1423 = vmatpush1.msra.mxu0 0.0
        %1424 = vmatprep.subr.mxu0 0.0
        %1425 = vmatpush1.msra.mxu0 0.0
        %1426 = vmatprep.subr.mxu0 0.0
        %1427 = vmatpush1.msra.mxu0 0.0
        %1428 = vmatprep.subr.mxu0 0.0
        %1429 = vmatpush1.msra.mxu0 0.0
        %1430 = vmatprep.subr.mxu0 0.0
        %1431 = vmatpush1.msra.mxu0 0.0
        %1432 = vmatprep.subr.mxu0 0.0
        %1433 = vmatpush1.msra.mxu0 0.0
        %1434 = vmatprep.subr.mxu0 0.0
        %1435 = vmatpush1.msra.mxu0 0.0
        %1436 = vmatprep.subr.mxu0 0.0
        %1437 = vmatpush1.msra.mxu0 0.0
        %1438 = vmatprep.subr.mxu0 0.0
        %1439 = vmatpush1.msra.mxu0 0.0
        %1440 = vmatprep.subr.mxu0 0.0
        %1441 = vmatpush1.msra.mxu0 0.0
        %1442 = vmatprep.subr.mxu0 0.0
        %1443 = vmatpush1.msra.mxu0 0.0
        %1444 = vmatprep.subr.mxu0 0.0
        %1445 = vmatpush1.msra.mxu0 0.0
        %1446 = vmatprep.subr.mxu0 0.0
        %1447 = vmatpush1.msra.mxu0 0.0
        %1448 = vmatprep.subr.mxu0 0.0
        %1449 = vmatpush1.msra.mxu0 0.0
        %1450 = vmatprep.subr.mxu0 0.0
        %1451 = vmatpush1.msra.mxu0 0.0
        %1452 = vmatprep.subr.mxu0 0.0
        %1453 = vmatpush1.msra.mxu0 0.0
        %1454 = vmatprep.subr.mxu0 0.0
        %1455 = vmatpush1.msra.mxu0 0.0
        %1456 = vmatprep.subr.mxu0 0.0
        %1457 = vmatpush1.msra.mxu0 0.0
        %1458 = vmatprep.subr.mxu0 0.0
        %1459 = vmatpush1.msra.mxu0 0.0
        %1460 = vmatprep.mubr.f32.mxu0 0.0
        %1461 = vmatmul.mubr.f32.gmra.mrb[0].mxu0 %v1394
        %v1462 = vpop.f32.mrb[0].mxu0
        %v1463 = vadd.f32 0.0, %v1462
        %v1464 = vpop.f32.mrb[0].mxu0
        %1465 = vdwg.mxu0
        %v1466 = vld [vmem:[#allocation7 + $0x20] sm:$0xff]
        %v1468 = vsel %vm345, %v1463, 0
        %1470 = vmatprep.subr.mxu0 0.0
        %1471 = vmatpush1.msra.mxu0 %v1466
        %1472 = vmatprep.subr.mxu0 0.0
        %1473 = vmatpush1.msra.mxu0 0.0
        %1474 = vmatprep.subr.mxu0 0.0
        %1475 = vmatpush1.msra.mxu0 0.0
        %1476 = vmatprep.subr.mxu0 0.0
        %1477 = vmatpush1.msra.mxu0 0.0
        %1478 = vmatprep.subr.mxu0 0.0
        %1479 = vmatpush1.msra.mxu0 0.0
        %1480 = vmatprep.subr.mxu0 0.0
        %1481 = vmatpush1.msra.mxu0 0.0
        %1482 = vmatprep.subr.mxu0 0.0
        %1483 = vmatpush1.msra.mxu0 0.0
        %1484 = vmatprep.subr.mxu0 0.0
        %1485 = vmatpush1.msra.mxu0 0.0
        %1486 = vmatprep.subr.mxu0 0.0
        %1487 = vmatpush1.msra.mxu0 0.0
        %1488 = vmatprep.subr.mxu0 0.0
        %1489 = vmatpush1.msra.mxu0 0.0
        %1490 = vmatprep.subr.mxu0 0.0
        %1491 = vmatpush1.msra.mxu0 0.0
        %1492 = vmatprep.subr.mxu0 0.0
        %1493 = vmatpush1.msra.mxu0 0.0
        %1494 = vmatprep.subr.mxu0 0.0
        %1495 = vmatpush1.msra.mxu0 0.0
        %1496 = vmatprep.subr.mxu0 0.0
        %1497 = vmatpush1.msra.mxu0 0.0
        %1498 = vmatprep.subr.mxu0 0.0
        %1499 = vmatpush1.msra.mxu0 0.0
        %1500 = vmatprep.subr.mxu0 0.0
        %1501 = vmatpush1.msra.mxu0 0.0
        %1502 = vmatprep.subr.mxu0 0.0
        %1503 = vmatpush1.msra.mxu0 0.0
        %1504 = vmatprep.subr.mxu0 0.0
        %1505 = vmatpush1.msra.mxu0 0.0
        %1506 = vmatprep.subr.mxu0 0.0
        %1507 = vmatpush1.msra.mxu0 0.0
        %1508 = vmatprep.subr.mxu0 0.0
        %1509 = vmatpush1.msra.mxu0 0.0
        %1510 = vmatprep.subr.mxu0 0.0
        %1511 = vmatpush1.msra.mxu0 0.0
        %1512 = vmatprep.subr.mxu0 0.0
        %1513 = vmatpush1.msra.mxu0 0.0
        %1514 = vmatprep.subr.mxu0 0.0
        %1515 = vmatpush1.msra.mxu0 0.0
        %1516 = vmatprep.subr.mxu0 0.0
        %1517 = vmatpush1.msra.mxu0 0.0
        %1518 = vmatprep.subr.mxu0 0.0
        %1519 = vmatpush1.msra.mxu0 0.0
        %1520 = vmatprep.subr.mxu0 0.0
        %1521 = vmatpush1.msra.mxu0 0.0
        %1522 = vmatprep.subr.mxu0 0.0
        %1523 = vmatpush1.msra.mxu0 0.0
        %1524 = vmatprep.subr.mxu0 0.0
        %1525 = vmatpush1.msra.mxu0 0.0
        %1526 = vmatprep.subr.mxu0 0.0
        %1527 = vmatpush1.msra.mxu0 0.0
        %1528 = vmatprep.subr.mxu0 0.0
        %1529 = vmatpush1.msra.mxu0 0.0
        %1530 = vmatprep.subr.mxu0 0.0
        %1531 = vmatpush1.msra.mxu0 0.0
        %1532 = vmatprep.subr.mxu0 0.0
        %1533 = vmatpush1.msra.mxu0 0.0
        %1534 = vmatprep.mubr.f32.mxu0 0.0
        %1535 = vmatmul.mubr.f32.gmra.mrb[0].mxu0 %v1468
        %v1536 = vpop.f32.mrb[0].mxu0
        %v1537 = vadd.f32 0.0, %v1536
        %v1538 = vpop.f32.mrb[0].mxu0
        %1539 = vdwg.mxu0
        %v1540 = vadd.f32 %v1300, %v1537
        %1541 = vrot.lane.b32.xlu0 %v334, 88
        %v1542 = vpop.permute.xlu0 %1541
        %1543 = vrot.lane.b32.xlu0 %v330, 24
        %v1544 = vpop.permute.xlu0 %1543
        %v1545 = vsel %vm345, %v1542, 0
        %v1547 = vsel %vm345, %v1544, 0
        %1549 = vmatprep.subr.mxu0 0.0
        %1550 = vmatpush1.xpose.msra.mxu0 %v1547
        %1551 = vmatprep.subr.mxu0 0.0
        %1552 = vmatpush1.xpose.msra.mxu0 0.0
        %1553 = vmatprep.subr.mxu0 0.0
        %1554 = vmatpush1.xpose.msra.mxu0 0.0
        %1555 = vmatprep.subr.mxu0 0.0
        %1556 = vmatpush1.xpose.msra.mxu0 0.0
        %1557 = vmatprep.subr.mxu0 0.0
        %1558 = vmatpush1.xpose.msra.mxu0 0.0
        %1559 = vmatprep.subr.mxu0 0.0
        %1560 = vmatpush1.xpose.msra.mxu0 0.0
        %1561 = vmatprep.subr.mxu0 0.0
        %1562 = vmatpush1.xpose.msra.mxu0 0.0
        %1563 = vmatprep.subr.mxu0 0.0
        %1564 = vmatpush1.xpose.msra.mxu0 0.0
        %1565 = vmatprep.subr.mxu0 0.0
        %1566 = vmatpush1.xpose.msra.mxu0 0.0
        %1567 = vmatprep.subr.mxu0 0.0
        %1568 = vmatpush1.xpose.msra.mxu0 0.0
        %1569 = vmatprep.subr.mxu0 0.0
        %1570 = vmatpush1.xpose.msra.mxu0 0.0
        %1571 = vmatprep.subr.mxu0 0.0
        %1572 = vmatpush1.xpose.msra.mxu0 0.0
        %1573 = vmatprep.subr.mxu0 0.0
        %1574 = vmatpush1.xpose.msra.mxu0 0.0
        %1575 = vmatprep.subr.mxu0 0.0
        %1576 = vmatpush1.xpose.msra.mxu0 0.0
        %1577 = vmatprep.subr.mxu0 0.0
        %1578 = vmatpush1.xpose.msra.mxu0 0.0
        %1579 = vmatprep.subr.mxu0 0.0
        %1580 = vmatpush1.xpose.msra.mxu0 0.0
        %1581 = vmatprep.subr.mxu0 0.0
        %1582 = vmatpush1.xpose.msra.mxu0 0.0
        %1583 = vmatprep.subr.mxu0 0.0
        %1584 = vmatpush1.xpose.msra.mxu0 0.0
        %1585 = vmatprep.subr.mxu0 0.0
        %1586 = vmatpush1.xpose.msra.mxu0 0.0
        %1587 = vmatprep.subr.mxu0 0.0
        %1588 = vmatpush1.xpose.msra.mxu0 0.0
        %1589 = vmatprep.subr.mxu0 0.0
        %1590 = vmatpush1.xpose.msra.mxu0 0.0
        %1591 = vmatprep.subr.mxu0 0.0
        %1592 = vmatpush1.xpose.msra.mxu0 0.0
        %1593 = vmatprep.subr.mxu0 0.0
        %1594 = vmatpush1.xpose.msra.mxu0 0.0
        %1595 = vmatprep.subr.mxu0 0.0
        %1596 = vmatpush1.xpose.msra.mxu0 0.0
        %1597 = vmatprep.subr.mxu0 0.0
        %1598 = vmatpush1.xpose.msra.mxu0 0.0
        %1599 = vmatprep.subr.mxu0 0.0
        %1600 = vmatpush1.xpose.msra.mxu0 0.0
        %1601 = vmatprep.subr.mxu0 0.0
        %1602 = vmatpush1.xpose.msra.mxu0 0.0
        %1603 = vmatprep.subr.mxu0 0.0
        %1604 = vmatpush1.xpose.msra.mxu0 0.0
        %1605 = vmatprep.subr.mxu0 0.0
        %1606 = vmatpush1.xpose.msra.mxu0 0.0
        %1607 = vmatprep.subr.mxu0 0.0
        %1608 = vmatpush1.xpose.msra.mxu0 0.0
        %1609 = vmatprep.subr.mxu0 0.0
        %1610 = vmatpush1.xpose.msra.mxu0 0.0
        %1611 = vmatprep.subr.mxu0 0.0
        %1612 = vmatpush1.xpose.msra.mxu0 0.0
        %1613 = vmatprep.mubr.f32.mxu0 0.0
        %1614 = vmatmul.mubr.f32.gmra.mrb[0].mxu0 %v1545
        %v1615 = vpop.f32.mrb[0].mxu0
        %v1616 = vadd.f32 0.0, %v1615
        %v1617 = vpop.f32.mrb[0].mxu0
        %1618 = vdwg.mxu0
        %v1619 = vsel %vm345, %v1616, -inf
        %1620 = vmax.xlane.f32.xlu0 %v1619
        %v1621 = vpop.xlane.xlu0 %1620
        %v1622 = vsub.f32 %v1616, %v1621
        %v1623 = vmul.f32 %v1622, 1.442695
        %v1624 = vpow.pop %v1623
        %v1625 = vsel %vm345, %v1624, 0.0
        %1626 = vadd.xlane.f32.xlu0 %v1625
        %v1627 = vpop.xlane.xlu0 %1626
        %v1628 = vrcp.pop %v1627
        %v1629 = vmul.f32 %v1624, %v1628
        %1630 = vrot.lane.b32.xlu0 %v332, 88
        %v1631 = vpop.permute.xlu0 %1630
        %v1634 = vsel %vm345, %v1629, 0
        %1636 = vmatprep.subr.mxu0 0.0
        %1637 = vmatpush1.msra.mxu0 %v1631
        %1638 = vmatprep.subr.mxu0 0.0
        %1639 = vmatpush1.msra.mxu0 0.0
        %1640 = vmatprep.subr.mxu0 0.0
        %1641 = vmatpush1.msra.mxu0 0.0
        %1642 = vmatprep.subr.mxu0 0.0
        %1643 = vmatpush1.msra.mxu0 0.0
        %1644 = vmatprep.subr.mxu0 0.0
        %1645 = vmatpush1.msra.mxu0 0.0
        %1646 = vmatprep.subr.mxu0 0.0
        %1647 = vmatpush1.msra.mxu0 0.0
        %1648 = vmatprep.subr.mxu0 0.0
        %1649 = vmatpush1.msra.mxu0 0.0
        %1650 = vmatprep.subr.mxu0 0.0
        %1651 = vmatpush1.msra.mxu0 0.0
        %1652 = vmatprep.subr.mxu0 0.0
        %1653 = vmatpush1.msra.mxu0 0.0
        %1654 = vmatprep.subr.mxu0 0.0
        %1655 = vmatpush1.msra.mxu0 0.0
        %1656 = vmatprep.subr.mxu0 0.0
        %1657 = vmatpush1.msra.mxu0 0.0
        %1658 = vmatprep.subr.mxu0 0.0
        %1659 = vmatpush1.msra.mxu0 0.0
        %1660 = vmatprep.subr.mxu0 0.0
        %1661 = vmatpush1.msra.mxu0 0.0
        %1662 = vmatprep.subr.mxu0 0.0
        %1663 = vmatpush1.msra.mxu0 0.0
        %1664 = vmatprep.subr.mxu0 0.0
        %1665 = vmatpush1.msra.mxu0 0.0
        %1666 = vmatprep.subr.mxu0 0.0
        %1667 = vmatpush1.msra.mxu0 0.0
        %1668 = vmatprep.subr.mxu0 0.0
        %1669 = vmatpush1.msra.mxu0 0.0
        %1670 = vmatprep.subr.mxu0 0.0
        %1671 = vmatpush1.msra.mxu0 0.0
        %1672 = vmatprep.subr.mxu0 0.0
        %1673 = vmatpush1.msra.mxu0 0.0
        %1674 = vmatprep.subr.mxu0 0.0
        %1675 = vmatpush1.msra.mxu0 0.0
        %1676 = vmatprep.subr.mxu0 0.0
        %1677 = vmatpush1.msra.mxu0 0.0
        %1678 = vmatprep.subr.mxu0 0.0
        %1679 = vmatpush1.msra.mxu0 0.0
        %1680 = vmatprep.subr.mxu0 0.0
        %1681 = vmatpush1.msra.mxu0 0.0
        %1682 = vmatprep.subr.mxu0 0.0
        %1683 = vmatpush1.msra.mxu0 0.0
        %1684 = vmatprep.subr.mxu0 0.0
        %1685 = vmatpush1.msra.mxu0 0.0
        %1686 = vmatprep.subr.mxu0 0.0
        %1687 = vmatpush1.msra.mxu0 0.0
        %1688 = vmatprep.subr.mxu0 0.0
        %1689 = vmatpush1.msra.mxu0 0.0
        %1690 = vmatprep.subr.mxu0 0.0
        %1691 = vmatpush1.msra.mxu0 0.0
        %1692 = vmatprep.subr.mxu0 0.0
        %1693 = vmatpush1.msra.mxu0 0.0
        %1694 = vmatprep.subr.mxu0 0.0
        %1695 = vmatpush1.msra.mxu0 0.0
        %1696 = vmatprep.subr.mxu0 0.0
        %1697 = vmatpush1.msra.mxu0 0.0
        %1698 = vmatprep.subr.mxu0 0.0
        %1699 = vmatpush1.msra.mxu0 0.0
        %1700 = vmatprep.mubr.f32.mxu0 0.0
        %1701 = vmatmul.mubr.f32.gmra.mrb[0].mxu0 %v1634
        %v1702 = vpop.f32.mrb[0].mxu0
        %v1703 = vadd.f32 0.0, %v1702
        %v1704 = vpop.f32.mrb[0].mxu0
        %1705 = vdwg.mxu0
        %v1706 = vld [vmem:[#allocation7 + $0x28] sm:$0xff]
        %v1708 = vsel %vm345, %v1703, 0
        %1710 = vmatprep.subr.mxu0 0.0
        %1711 = vmatpush1.msra.mxu0 %v1706
        %1712 = vmatprep.subr.mxu0 0.0
        %1713 = vmatpush1.msra.mxu0 0.0
        %1714 = vmatprep.subr.mxu0 0.0
        %1715 = vmatpush1.msra.mxu0 0.0
        %1716 = vmatprep.subr.mxu0 0.0
        %1717 = vmatpush1.msra.mxu0 0.0
        %1718 = vmatprep.subr.mxu0 0.0
        %1719 = vmatpush1.msra.mxu0 0.0
        %1720 = vmatprep.subr.mxu0 0.0
        %1721 = vmatpush1.msra.mxu0 0.0
        %1722 = vmatprep.subr.mxu0 0.0
        %1723 = vmatpush1.msra.mxu0 0.0
        %1724 = vmatprep.subr.mxu0 0.0
        %1725 = vmatpush1.msra.mxu0 0.0
        %1726 = vmatprep.subr.mxu0 0.0
        %1727 = vmatpush1.msra.mxu0 0.0
        %1728 = vmatprep.subr.mxu0 0.0
        %1729 = vmatpush1.msra.mxu0 0.0
        %1730 = vmatprep.subr.mxu0 0.0
        %1731 = vmatpush1.msra.mxu0 0.0
        %1732 = vmatprep.subr.mxu0 0.0
        %1733 = vmatpush1.msra.mxu0 0.0
        %1734 = vmatprep.subr.mxu0 0.0
        %1735 = vmatpush1.msra.mxu0 0.0
        %1736 = vmatprep.subr.mxu0 0.0
        %1737 = vmatpush1.msra.mxu0 0.0
        %1738 = vmatprep.subr.mxu0 0.0
        %1739 = vmatpush1.msra.mxu0 0.0
        %1740 = vmatprep.subr.mxu0 0.0
        %1741 = vmatpush1.msra.mxu0 0.0
        %1742 = vmatprep.subr.mxu0 0.0
        %1743 = vmatpush1.msra.mxu0 0.0
        %1744 = vmatprep.subr.mxu0 0.0
        %1745 = vmatpush1.msra.mxu0 0.0
        %1746 = vmatprep.subr.mxu0 0.0
        %1747 = vmatpush1.msra.mxu0 0.0
        %1748 = vmatprep.subr.mxu0 0.0
        %1749 = vmatpush1.msra.mxu0 0.0
        %1750 = vmatprep.subr.mxu0 0.0
        %1751 = vmatpush1.msra.mxu0 0.0
        %1752 = vmatprep.subr.mxu0 0.0
        %1753 = vmatpush1.msra.mxu0 0.0
        %1754 = vmatprep.subr.mxu0 0.0
        %1755 = vmatpush1.msra.mxu0 0.0
        %1756 = vmatprep.subr.mxu0 0.0
        %1757 = vmatpush1.msra.mxu0 0.0
        %1758 = vmatprep.subr.mxu0 0.0
        %1759 = vmatpush1.msra.mxu0 0.0
        %1760 = vmatprep.subr.mxu0 0.0
        %1761 = vmatpush1.msra.mxu0 0.0
        %1762 = vmatprep.subr.mxu0 0.0
        %1763 = vmatpush1.msra.mxu0 0.0
        %1764 = vmatprep.subr.mxu0 0.0
        %1765 = vmatpush1.msra.mxu0 0.0
        %1766 = vmatprep.subr.mxu0 0.0
        %1767 = vmatpush1.msra.mxu0 0.0
        %1768 = vmatprep.subr.mxu0 0.0
        %1769 = vmatpush1.msra.mxu0 0.0
        %1770 = vmatprep.subr.mxu0 0.0
        %1771 = vmatpush1.msra.mxu0 0.0
        %1772 = vmatprep.subr.mxu0 0.0
        %1773 = vmatpush1.msra.mxu0 0.0
        %1774 = vmatprep.mubr.f32.mxu0 0.0
        %1775 = vmatmul.mubr.f32.gmra.mrb[0].mxu0 %v1708
        %v1776 = vpop.f32.mrb[0].mxu0
        %v1777 = vadd.f32 0.0, %v1776
        %v1778 = vpop.f32.mrb[0].mxu0
        %1779 = vdwg.mxu0
        %v1780 = vadd.f32 %v1540, %v1777
        %1781 = vrot.lane.b32.xlu0 %v334, 80
        %v1782 = vpop.permute.xlu0 %1781
        %1783 = vrot.lane.b32.xlu0 %v330, 16
        %v1784 = vpop.permute.xlu0 %1783
        %v1785 = vsel %vm345, %v1782, 0
        %v1787 = vsel %vm345, %v1784, 0
        %1789 = vmatprep.subr.mxu0 0.0
        %1790 = vmatpush1.xpose.msra.mxu0 %v1787
        %1791 = vmatprep.subr.mxu0 0.0
        %1792 = vmatpush1.xpose.msra.mxu0 0.0
        %1793 = vmatprep.subr.mxu0 0.0
        %1794 = vmatpush1.xpose.msra.mxu0 0.0
        %1795 = vmatprep.subr.mxu0 0.0
        %1796 = vmatpush1.xpose.msra.mxu0 0.0
        %1797 = vmatprep.subr.mxu0 0.0
        %1798 = vmatpush1.xpose.msra.mxu0 0.0
        %1799 = vmatprep.subr.mxu0 0.0
        %1800 = vmatpush1.xpose.msra.mxu0 0.0
        %1801 = vmatprep.subr.mxu0 0.0
        %1802 = vmatpush1.xpose.msra.mxu0 0.0
        %1803 = vmatprep.subr.mxu0 0.0
        %1804 = vmatpush1.xpose.msra.mxu0 0.0
        %1805 = vmatprep.subr.mxu0 0.0
        %1806 = vmatpush1.xpose.msra.mxu0 0.0
        %1807 = vmatprep.subr.mxu0 0.0
        %1808 = vmatpush1.xpose.msra.mxu0 0.0
        %1809 = vmatprep.subr.mxu0 0.0
        %1810 = vmatpush1.xpose.msra.mxu0 0.0
        %1811 = vmatprep.subr.mxu0 0.0
        %1812 = vmatpush1.xpose.msra.mxu0 0.0
        %1813 = vmatprep.subr.mxu0 0.0
        %1814 = vmatpush1.xpose.msra.mxu0 0.0
        %1815 = vmatprep.subr.mxu0 0.0
        %1816 = vmatpush1.xpose.msra.mxu0 0.0
        %1817 = vmatprep.subr.mxu0 0.0
        %1818 = vmatpush1.xpose.msra.mxu0 0.0
        %1819 = vmatprep.subr.mxu0 0.0
        %1820 = vmatpush1.xpose.msra.mxu0 0.0
        %1821 = vmatprep.subr.mxu0 0.0
        %1822 = vmatpush1.xpose.msra.mxu0 0.0
        %1823 = vmatprep.subr.mxu0 0.0
        %1824 = vmatpush1.xpose.msra.mxu0 0.0
        %1825 = vmatprep.subr.mxu0 0.0
        %1826 = vmatpush1.xpose.msra.mxu0 0.0
        %1827 = vmatprep.subr.mxu0 0.0
        %1828 = vmatpush1.xpose.msra.mxu0 0.0
        %1829 = vmatprep.subr.mxu0 0.0
        %1830 = vmatpush1.xpose.msra.mxu0 0.0
        %1831 = vmatprep.subr.mxu0 0.0
        %1832 = vmatpush1.xpose.msra.mxu0 0.0
        %1833 = vmatprep.subr.mxu0 0.0
        %1834 = vmatpush1.xpose.msra.mxu0 0.0
        %1835 = vmatprep.subr.mxu0 0.0
        %1836 = vmatpush1.xpose.msra.mxu0 0.0
        %1837 = vmatprep.subr.mxu0 0.0
        %1838 = vmatpush1.xpose.msra.mxu0 0.0
        %1839 = vmatprep.subr.mxu0 0.0
        %1840 = vmatpush1.xpose.msra.mxu0 0.0
        %1841 = vmatprep.subr.mxu0 0.0
        %1842 = vmatpush1.xpose.msra.mxu0 0.0
        %1843 = vmatprep.subr.mxu0 0.0
        %1844 = vmatpush1.xpose.msra.mxu0 0.0
        %1845 = vmatprep.subr.mxu0 0.0
        %1846 = vmatpush1.xpose.msra.mxu0 0.0
        %1847 = vmatprep.subr.mxu0 0.0
        %1848 = vmatpush1.xpose.msra.mxu0 0.0
        %1849 = vmatprep.subr.mxu0 0.0
        %1850 = vmatpush1.xpose.msra.mxu0 0.0
        %1851 = vmatprep.subr.mxu0 0.0
        %1852 = vmatpush1.xpose.msra.mxu0 0.0
        %1853 = vmatprep.mubr.f32.mxu0 0.0
        %1854 = vmatmul.mubr.f32.gmra.mrb[0].mxu0 %v1785
        %v1855 = vpop.f32.mrb[0].mxu0
        %v1856 = vadd.f32 0.0, %v1855
        %v1857 = vpop.f32.mrb[0].mxu0
        %1858 = vdwg.mxu0
        %v1859 = vsel %vm345, %v1856, -inf
        %1860 = vmax.xlane.f32.xlu0 %v1859
        %v1861 = vpop.xlane.xlu0 %1860
        %v1862 = vsub.f32 %v1856, %v1861
        %v1863 = vmul.f32 %v1862, 1.442695
        %v1864 = vpow.pop %v1863
        %v1865 = vsel %vm345, %v1864, 0.0
        %1866 = vadd.xlane.f32.xlu0 %v1865
        %v1867 = vpop.xlane.xlu0 %1866
        %v1868 = vrcp.pop %v1867
        %v1869 = vmul.f32 %v1864, %v1868
        %1870 = vrot.lane.b32.xlu0 %v332, 80
        %v1871 = vpop.permute.xlu0 %1870
        %v1874 = vsel %vm345, %v1869, 0
        %1876 = vmatprep.subr.mxu0 0.0
        %1877 = vmatpush1.msra.mxu0 %v1871
        %1878 = vmatprep.subr.mxu0 0.0
        %1879 = vmatpush1.msra.mxu0 0.0
        %1880 = vmatprep.subr.mxu0 0.0
        %1881 = vmatpush1.msra.mxu0 0.0
        %1882 = vmatprep.subr.mxu0 0.0
        %1883 = vmatpush1.msra.mxu0 0.0
        %1884 = vmatprep.subr.mxu0 0.0
        %1885 = vmatpush1.msra.mxu0 0.0
        %1886 = vmatprep.subr.mxu0 0.0
        %1887 = vmatpush1.msra.mxu0 0.0
        %1888 = vmatprep.subr.mxu0 0.0
        %1889 = vmatpush1.msra.mxu0 0.0
        %1890 = vmatprep.subr.mxu0 0.0
        %1891 = vmatpush1.msra.mxu0 0.0
        %1892 = vmatprep.subr.mxu0 0.0
        %1893 = vmatpush1.msra.mxu0 0.0
        %1894 = vmatprep.subr.mxu0 0.0
        %1895 = vmatpush1.msra.mxu0 0.0
        %1896 = vmatprep.subr.mxu0 0.0
        %1897 = vmatpush1.msra.mxu0 0.0
        %1898 = vmatprep.subr.mxu0 0.0
        %1899 = vmatpush1.msra.mxu0 0.0
        %1900 = vmatprep.subr.mxu0 0.0
        %1901 = vmatpush1.msra.mxu0 0.0
        %1902 = vmatprep.subr.mxu0 0.0
        %1903 = vmatpush1.msra.mxu0 0.0
        %1904 = vmatprep.subr.mxu0 0.0
        %1905 = vmatpush1.msra.mxu0 0.0
        %1906 = vmatprep.subr.mxu0 0.0
        %1907 = vmatpush1.msra.mxu0 0.0
        %1908 = vmatprep.subr.mxu0 0.0
        %1909 = vmatpush1.msra.mxu0 0.0
        %1910 = vmatprep.subr.mxu0 0.0
        %1911 = vmatpush1.msra.mxu0 0.0
        %1912 = vmatprep.subr.mxu0 0.0
        %1913 = vmatpush1.msra.mxu0 0.0
        %1914 = vmatprep.subr.mxu0 0.0
        %1915 = vmatpush1.msra.mxu0 0.0
        %1916 = vmatprep.subr.mxu0 0.0
        %1917 = vmatpush1.msra.mxu0 0.0
        %1918 = vmatprep.subr.mxu0 0.0
        %1919 = vmatpush1.msra.mxu0 0.0
        %1920 = vmatprep.subr.mxu0 0.0
        %1921 = vmatpush1.msra.mxu0 0.0
        %1922 = vmatprep.subr.mxu0 0.0
        %1923 = vmatpush1.msra.mxu0 0.0
        %1924 = vmatprep.subr.mxu0 0.0
        %1925 = vmatpush1.msra.mxu0 0.0
        %1926 = vmatprep.subr.mxu0 0.0
        %1927 = vmatpush1.msra.mxu0 0.0
        %1928 = vmatprep.subr.mxu0 0.0
        %1929 = vmatpush1.msra.mxu0 0.0
        %1930 = vmatprep.subr.mxu0 0.0
        %1931 = vmatpush1.msra.mxu0 0.0
        %1932 = vmatprep.subr.mxu0 0.0
        %1933 = vmatpush1.msra.mxu0 0.0
        %1934 = vmatprep.subr.mxu0 0.0
        %1935 = vmatpush1.msra.mxu0 0.0
        %1936 = vmatprep.subr.mxu0 0.0
        %1937 = vmatpush1.msra.mxu0 0.0
        %1938 = vmatprep.subr.mxu0 0.0
        %1939 = vmatpush1.msra.mxu0 0.0
        %1940 = vmatprep.mubr.f32.mxu0 0.0
        %1941 = vmatmul.mubr.f32.gmra.mrb[0].mxu0 %v1874
        %v1942 = vpop.f32.mrb[0].mxu0
        %v1943 = vadd.f32 0.0, %v1942
        %v1944 = vpop.f32.mrb[0].mxu0
        %1945 = vdwg.mxu0
        %v1946 = vld [vmem:[#allocation7 + $0x30] sm:$0xff]
        %v1948 = vsel %vm345, %v1943, 0
        %1950 = vmatprep.subr.mxu0 0.0
        %1951 = vmatpush1.msra.mxu0 %v1946
        %1952 = vmatprep.subr.mxu0 0.0
        %1953 = vmatpush1.msra.mxu0 0.0
        %1954 = vmatprep.subr.mxu0 0.0
        %1955 = vmatpush1.msra.mxu0 0.0
        %1956 = vmatprep.subr.mxu0 0.0
        %1957 = vmatpush1.msra.mxu0 0.0
        %1958 = vmatprep.subr.mxu0 0.0
        %1959 = vmatpush1.msra.mxu0 0.0
        %1960 = vmatprep.subr.mxu0 0.0
        %1961 = vmatpush1.msra.mxu0 0.0
        %1962 = vmatprep.subr.mxu0 0.0
        %1963 = vmatpush1.msra.mxu0 0.0
        %1964 = vmatprep.subr.mxu0 0.0
        %1965 = vmatpush1.msra.mxu0 0.0
        %1966 = vmatprep.subr.mxu0 0.0
        %1967 = vmatpush1.msra.mxu0 0.0
        %1968 = vmatprep.subr.mxu0 0.0
        %1969 = vmatpush1.msra.mxu0 0.0
        %1970 = vmatprep.subr.mxu0 0.0
        %1971 = vmatpush1.msra.mxu0 0.0
        %1972 = vmatprep.subr.mxu0 0.0
        %1973 = vmatpush1.msra.mxu0 0.0
        %1974 = vmatprep.subr.mxu0 0.0
        %1975 = vmatpush1.msra.mxu0 0.0
        %1976 = vmatprep.subr.mxu0 0.0
        %1977 = vmatpush1.msra.mxu0 0.0
        %1978 = vmatprep.subr.mxu0 0.0
        %1979 = vmatpush1.msra.mxu0 0.0
        %1980 = vmatprep.subr.mxu0 0.0
        %1981 = vmatpush1.msra.mxu0 0.0
        %1982 = vmatprep.subr.mxu0 0.0
        %1983 = vmatpush1.msra.mxu0 0.0
        %1984 = vmatprep.subr.mxu0 0.0
        %1985 = vmatpush1.msra.mxu0 0.0
        %1986 = vmatprep.subr.mxu0 0.0
        %1987 = vmatpush1.msra.mxu0 0.0
        %1988 = vmatprep.subr.mxu0 0.0
        %1989 = vmatpush1.msra.mxu0 0.0
        %1990 = vmatprep.subr.mxu0 0.0
        %1991 = vmatpush1.msra.mxu0 0.0
        %1992 = vmatprep.subr.mxu0 0.0
        %1993 = vmatpush1.msra.mxu0 0.0
        %1994 = vmatprep.subr.mxu0 0.0
        %1995 = vmatpush1.msra.mxu0 0.0
        %1996 = vmatprep.subr.mxu0 0.0
        %1997 = vmatpush1.msra.mxu0 0.0
        %1998 = vmatprep.subr.mxu0 0.0
        %1999 = vmatpush1.msra.mxu0 0.0
        %2000 = vmatprep.subr.mxu0 0.0
        %2001 = vmatpush1.msra.mxu0 0.0
        %2002 = vmatprep.subr.mxu0 0.0
        %2003 = vmatpush1.msra.mxu0 0.0
        %2004 = vmatprep.subr.mxu0 0.0
        %2005 = vmatpush1.msra.mxu0 0.0
        %2006 = vmatprep.subr.mxu0 0.0
        %2007 = vmatpush1.msra.mxu0 0.0
        %2008 = vmatprep.subr.mxu0 0.0
        %2009 = vmatpush1.msra.mxu0 0.0
        %2010 = vmatprep.subr.mxu0 0.0
        %2011 = vmatpush1.msra.mxu0 0.0
        %2012 = vmatprep.subr.mxu0 0.0
        %2013 = vmatpush1.msra.mxu0 0.0
        %2014 = vmatprep.mubr.f32.mxu0 0.0
        %2015 = vmatmul.mubr.f32.gmra.mrb[0].mxu0 %v1948
        %v2016 = vpop.f32.mrb[0].mxu0
        %v2017 = vadd.f32 0.0, %v2016
        %v2018 = vpop.f32.mrb[0].mxu0
        %2019 = vdwg.mxu0
        %v2020 = vadd.f32 %v1780, %v2017
        %2021 = vrot.lane.b32.xlu0 %v334, 72
        %v2022 = vpop.permute.xlu0 %2021
        %2023 = vrot.lane.b32.xlu0 %v330, 8
        %v2024 = vpop.permute.xlu0 %2023
        %v2025 = vsel %vm345, %v2022, 0
        %v2027 = vsel %vm345, %v2024, 0
        %2029 = vmatprep.subr.mxu0 0.0
        %2030 = vmatpush1.xpose.msra.mxu0 %v2027
        %2031 = vmatprep.subr.mxu0 0.0
        %2032 = vmatpush1.xpose.msra.mxu0 0.0
        %2033 = vmatprep.subr.mxu0 0.0
        %2034 = vmatpush1.xpose.msra.mxu0 0.0
        %2035 = vmatprep.subr.mxu0 0.0
        %2036 = vmatpush1.xpose.msra.mxu0 0.0
        %2037 = vmatprep.subr.mxu0 0.0
        %2038 = vmatpush1.xpose.msra.mxu0 0.0
        %2039 = vmatprep.subr.mxu0 0.0
        %2040 = vmatpush1.xpose.msra.mxu0 0.0
        %2041 = vmatprep.subr.mxu0 0.0
        %2042 = vmatpush1.xpose.msra.mxu0 0.0
        %2043 = vmatprep.subr.mxu0 0.0
        %2044 = vmatpush1.xpose.msra.mxu0 0.0
        %2045 = vmatprep.subr.mxu0 0.0
        %2046 = vmatpush1.xpose.msra.mxu0 0.0
        %2047 = vmatprep.subr.mxu0 0.0
        %2048 = vmatpush1.xpose.msra.mxu0 0.0
        %2049 = vmatprep.subr.mxu0 0.0
        %2050 = vmatpush1.xpose.msra.mxu0 0.0
        %2051 = vmatprep.subr.mxu0 0.0
        %2052 = vmatpush1.xpose.msra.mxu0 0.0
        %2053 = vmatprep.subr.mxu0 0.0
        %2054 = vmatpush1.xpose.msra.mxu0 0.0
        %2055 = vmatprep.subr.mxu0 0.0
        %2056 = vmatpush1.xpose.msra.mxu0 0.0
        %2057 = vmatprep.subr.mxu0 0.0
        %2058 = vmatpush1.xpose.msra.mxu0 0.0
        %2059 = vmatprep.subr.mxu0 0.0
        %2060 = vmatpush1.xpose.msra.mxu0 0.0
        %2061 = vmatprep.subr.mxu0 0.0
        %2062 = vmatpush1.xpose.msra.mxu0 0.0
        %2063 = vmatprep.subr.mxu0 0.0
        %2064 = vmatpush1.xpose.msra.mxu0 0.0
        %2065 = vmatprep.subr.mxu0 0.0
        %2066 = vmatpush1.xpose.msra.mxu0 0.0
        %2067 = vmatprep.subr.mxu0 0.0
        %2068 = vmatpush1.xpose.msra.mxu0 0.0
        %2069 = vmatprep.subr.mxu0 0.0
        %2070 = vmatpush1.xpose.msra.mxu0 0.0
        %2071 = vmatprep.subr.mxu0 0.0
        %2072 = vmatpush1.xpose.msra.mxu0 0.0
        %2073 = vmatprep.subr.mxu0 0.0
        %2074 = vmatpush1.xpose.msra.mxu0 0.0
        %2075 = vmatprep.subr.mxu0 0.0
        %2076 = vmatpush1.xpose.msra.mxu0 0.0
        %2077 = vmatprep.subr.mxu0 0.0
        %2078 = vmatpush1.xpose.msra.mxu0 0.0
        %2079 = vmatprep.subr.mxu0 0.0
        %2080 = vmatpush1.xpose.msra.mxu0 0.0
        %2081 = vmatprep.subr.mxu0 0.0
        %2082 = vmatpush1.xpose.msra.mxu0 0.0
        %2083 = vmatprep.subr.mxu0 0.0
        %2084 = vmatpush1.xpose.msra.mxu0 0.0
        %2085 = vmatprep.subr.mxu0 0.0
        %2086 = vmatpush1.xpose.msra.mxu0 0.0
        %2087 = vmatprep.subr.mxu0 0.0
        %2088 = vmatpush1.xpose.msra.mxu0 0.0
        %2089 = vmatprep.subr.mxu0 0.0
        %2090 = vmatpush1.xpose.msra.mxu0 0.0
        %2091 = vmatprep.subr.mxu0 0.0
        %2092 = vmatpush1.xpose.msra.mxu0 0.0
        %2093 = vmatprep.mubr.f32.mxu0 0.0
        %2094 = vmatmul.mubr.f32.gmra.mrb[0].mxu0 %v2025
        %v2095 = vpop.f32.mrb[0].mxu0
        %v2096 = vadd.f32 0.0, %v2095
        %v2097 = vpop.f32.mrb[0].mxu0
        %2098 = vdwg.mxu0
        %v2099 = vsel %vm345, %v2096, -inf
        %2100 = vmax.xlane.f32.xlu0 %v2099
        %v2101 = vpop.xlane.xlu0 %2100
        %v2102 = vsub.f32 %v2096, %v2101
        %v2103 = vmul.f32 %v2102, 1.442695
        %v2104 = vpow.pop %v2103
        %v2105 = vsel %vm345, %v2104, 0.0
        %2106 = vadd.xlane.f32.xlu0 %v2105
        %v2107 = vpop.xlane.xlu0 %2106
        %v2108 = vrcp.pop %v2107
        %v2109 = vmul.f32 %v2104, %v2108
        %2110 = vrot.lane.b32.xlu0 %v332, 72
        %v2111 = vpop.permute.xlu0 %2110
        %v2114 = vsel %vm345, %v2109, 0
        %2116 = vmatprep.subr.mxu0 0.0
        %2117 = vmatpush1.msra.mxu0 %v2111
        %2118 = vmatprep.subr.mxu0 0.0
        %2119 = vmatpush1.msra.mxu0 0.0
        %2120 = vmatprep.subr.mxu0 0.0
        %2121 = vmatpush1.msra.mxu0 0.0
        %2122 = vmatprep.subr.mxu0 0.0
        %2123 = vmatpush1.msra.mxu0 0.0
        %2124 = vmatprep.subr.mxu0 0.0
        %2125 = vmatpush1.msra.mxu0 0.0
        %2126 = vmatprep.subr.mxu0 0.0
        %2127 = vmatpush1.msra.mxu0 0.0
        %2128 = vmatprep.subr.mxu0 0.0
        %2129 = vmatpush1.msra.mxu0 0.0
        %2130 = vmatprep.subr.mxu0 0.0
        %2131 = vmatpush1.msra.mxu0 0.0
        %2132 = vmatprep.subr.mxu0 0.0
        %2133 = vmatpush1.msra.mxu0 0.0
        %2134 = vmatprep.subr.mxu0 0.0
        %2135 = vmatpush1.msra.mxu0 0.0
        %2136 = vmatprep.subr.mxu0 0.0
        %2137 = vmatpush1.msra.mxu0 0.0
        %2138 = vmatprep.subr.mxu0 0.0
        %2139 = vmatpush1.msra.mxu0 0.0
        %2140 = vmatprep.subr.mxu0 0.0
        %2141 = vmatpush1.msra.mxu0 0.0
        %2142 = vmatprep.subr.mxu0 0.0
        %2143 = vmatpush1.msra.mxu0 0.0
        %2144 = vmatprep.subr.mxu0 0.0
        %2145 = vmatpush1.msra.mxu0 0.0
        %2146 = vmatprep.subr.mxu0 0.0
        %2147 = vmatpush1.msra.mxu0 0.0
        %2148 = vmatprep.subr.mxu0 0.0
        %2149 = vmatpush1.msra.mxu0 0.0
        %2150 = vmatprep.subr.mxu0 0.0
        %2151 = vmatpush1.msra.mxu0 0.0
        %2152 = vmatprep.subr.mxu0 0.0
        %2153 = vmatpush1.msra.mxu0 0.0
        %2154 = vmatprep.subr.mxu0 0.0
        %2155 = vmatpush1.msra.mxu0 0.0
        %2156 = vmatprep.subr.mxu0 0.0
        %2157 = vmatpush1.msra.mxu0 0.0
        %2158 = vmatprep.subr.mxu0 0.0
        %2159 = vmatpush1.msra.mxu0 0.0
        %2160 = vmatprep.subr.mxu0 0.0
        %2161 = vmatpush1.msra.mxu0 0.0
        %2162 = vmatprep.subr.mxu0 0.0
        %2163 = vmatpush1.msra.mxu0 0.0
        %2164 = vmatprep.subr.mxu0 0.0
        %2165 = vmatpush1.msra.mxu0 0.0
        %2166 = vmatprep.subr.mxu0 0.0
        %2167 = vmatpush1.msra.mxu0 0.0
        %2168 = vmatprep.subr.mxu0 0.0
        %2169 = vmatpush1.msra.mxu0 0.0
        %2170 = vmatprep.subr.mxu0 0.0
        %2171 = vmatpush1.msra.mxu0 0.0
        %2172 = vmatprep.subr.mxu0 0.0
        %2173 = vmatpush1.msra.mxu0 0.0
        %2174 = vmatprep.subr.mxu0 0.0
        %2175 = vmatpush1.msra.mxu0 0.0
        %2176 = vmatprep.subr.mxu0 0.0
        %2177 = vmatpush1.msra.mxu0 0.0
        %2178 = vmatprep.subr.mxu0 0.0
        %2179 = vmatpush1.msra.mxu0 0.0
        %2180 = vmatprep.mubr.f32.mxu0 0.0
        %2181 = vmatmul.mubr.f32.gmra.mrb[0].mxu0 %v2114
        %v2182 = vpop.f32.mrb[0].mxu0
        %v2183 = vadd.f32 0.0, %v2182
        %v2184 = vpop.f32.mrb[0].mxu0
        %2185 = vdwg.mxu0
        %v2186 = vld [vmem:[#allocation7 + $0x38] sm:$0xff]
        %v2188 = vsel %vm345, %v2183, 0
        %2190 = vmatprep.subr.mxu0 0.0
        %2191 = vmatpush1.msra.mxu0 %v2186
        %2192 = vmatprep.subr.mxu0 0.0
        %2193 = vmatpush1.msra.mxu0 0.0
        %2194 = vmatprep.subr.mxu0 0.0
        %2195 = vmatpush1.msra.mxu0 0.0
        %2196 = vmatprep.subr.mxu0 0.0
        %2197 = vmatpush1.msra.mxu0 0.0
        %2198 = vmatprep.subr.mxu0 0.0
        %2199 = vmatpush1.msra.mxu0 0.0
        %2200 = vmatprep.subr.mxu0 0.0
        %2201 = vmatpush1.msra.mxu0 0.0
        %2202 = vmatprep.subr.mxu0 0.0
        %2203 = vmatpush1.msra.mxu0 0.0
        %2204 = vmatprep.subr.mxu0 0.0
        %2205 = vmatpush1.msra.mxu0 0.0
        %2206 = vmatprep.subr.mxu0 0.0
        %2207 = vmatpush1.msra.mxu0 0.0
        %2208 = vmatprep.subr.mxu0 0.0
        %2209 = vmatpush1.msra.mxu0 0.0
        %2210 = vmatprep.subr.mxu0 0.0
        %2211 = vmatpush1.msra.mxu0 0.0
        %2212 = vmatprep.subr.mxu0 0.0
        %2213 = vmatpush1.msra.mxu0 0.0
        %2214 = vmatprep.subr.mxu0 0.0
        %2215 = vmatpush1.msra.mxu0 0.0
        %2216 = vmatprep.subr.mxu0 0.0
        %2217 = vmatpush1.msra.mxu0 0.0
        %2218 = vmatprep.subr.mxu0 0.0
        %2219 = vmatpush1.msra.mxu0 0.0
        %2220 = vmatprep.subr.mxu0 0.0
        %2221 = vmatpush1.msra.mxu0 0.0
        %2222 = vmatprep.subr.mxu0 0.0
        %2223 = vmatpush1.msra.mxu0 0.0
        %2224 = vmatprep.subr.mxu0 0.0
        %2225 = vmatpush1.msra.mxu0 0.0
        %2226 = vmatprep.subr.mxu0 0.0
        %2227 = vmatpush1.msra.mxu0 0.0
        %2228 = vmatprep.subr.mxu0 0.0
        %2229 = vmatpush1.msra.mxu0 0.0
        %2230 = vmatprep.subr.mxu0 0.0
        %2231 = vmatpush1.msra.mxu0 0.0
        %2232 = vmatprep.subr.mxu0 0.0
        %2233 = vmatpush1.msra.mxu0 0.0
        %2234 = vmatprep.subr.mxu0 0.0
        %2235 = vmatpush1.msra.mxu0 0.0
        %2236 = vmatprep.subr.mxu0 0.0
        %2237 = vmatpush1.msra.mxu0 0.0
        %2238 = vmatprep.subr.mxu0 0.0
        %2239 = vmatpush1.msra.mxu0 0.0
        %2240 = vmatprep.subr.mxu0 0.0
        %2241 = vmatpush1.msra.mxu0 0.0
        %2242 = vmatprep.subr.mxu0 0.0
        %2243 = vmatpush1.msra.mxu0 0.0
        %2244 = vmatprep.subr.mxu0 0.0
        %2245 = vmatpush1.msra.mxu0 0.0
        %2246 = vmatprep.subr.mxu0 0.0
        %2247 = vmatpush1.msra.mxu0 0.0
        %2248 = vmatprep.subr.mxu0 0.0
        %2249 = vmatpush1.msra.mxu0 0.0
        %2250 = vmatprep.subr.mxu0 0.0
        %2251 = vmatpush1.msra.mxu0 0.0
        %2252 = vmatprep.subr.mxu0 0.0
        %2253 = vmatpush1.msra.mxu0 0.0
        %2254 = vmatprep.mubr.f32.mxu0 0.0
        %2255 = vmatmul.mubr.f32.gmra.mrb[0].mxu0 %v2188
        %v2256 = vpop.f32.mrb[0].mxu0
        %v2257 = vadd.f32 0.0, %v2256
        %v2258 = vpop.f32.mrb[0].mxu0
        %2259 = vdwg.mxu0
        %v2260 = vadd.f32 %v2020, %v2257
        %2261 = vst.msk [vmem:[%s241] sm:$0xff] %vm259, %v2260
        %s2262 = sand.u32 %s119, 1
        %s2263 = scalar_lea.sflag [#allocation4], %s2262
        %s2264 = sand.u32 %s119, 1
        %s2265 = smul.addr %s2264, 8
        %s2266 = scalar_lea.vmem [#allocation8], %s2265
        // Predicated region
        $region49: #{tpu_custom_call.1} parent=35 // pred_check
          %p2267 = pneg %p129
        $region50: #{tpu_custom_call.1} parent=35 // pred_check_branch
          %2269 = sbr.rel (%p2267) target = $region52
        $region51: #{tpu_custom_call.1} parent=35 // pred_region
          %s2271 = ssub.s32 128, 128
          %2272 = vsyncadd %s2263, %s2271
          %s2273 = smul.addr %s22, 128
          %s2274 = scalar_lea.hbm %s4, %s2273
          %s2276 = sshll.u32 %s2266, 4
          %s2277 = int_to_ptr.vmem [resolvable:$true] %s2276
          %2279 = dma.vmem_to_hbm [thread:$0]  %s2277, 128, %s2274, %s2263
        $region52: #{tpu_custom_call.1} parent=35 // pred_fallthru
          _
      $region36: #{tpu_custom_call.1} parent=5 // pred_fallthru
        _
      %p2280 = scmp.le.s32.totalorder 2, %s17
      // Predicated region
      $region53: #{tpu_custom_call.1} parent=5 // pred_check
        %p2281 = pneg %p2280
      $region54: #{tpu_custom_call.1} parent=5 // pred_check_branch
        %2283 = sbr.rel (%p2281) target = $region56
      $region55: #{tpu_custom_call.1} parent=5 // pred_region
        %s2284 = ssub.s32 %s17, 2
        // Predicated region
        $region57: #{tpu_custom_call.1} parent=55 // pred_check
          %p2285 = pneg %p135
        $region58: #{tpu_custom_call.1} parent=55 // pred_check_branch
          %2287 = sbr.rel (%p2285) target = $region60
        $region59: #{tpu_custom_call.1} parent=55 // pred_region
          %s2288 = sand.u32 %s120, 1
          %s2289 = scalar_lea.sflag [#allocation4], %s2288
          %s2290 = sand.u32 %s120, 1
          %s2291 = smul.addr %s2290, 8
          %s2292 = scalar_lea.vmem [#allocation8], %s2291
          %2293 = dma.done %s2289, 128
        $region60: #{tpu_custom_call.1} parent=55 // pred_fallthru
          _
      $region56: #{tpu_custom_call.1} parent=5 // pred_fallthru
        _
    $region6: #{tpu_custom_call.1} parent=1 // loop_footer
      %s21 = sadd.s32 1, %s17
    $region7: #{tpu_custom_call.1} parent=1 // loop_footer_branch
      %16 = sbr.rel target = $region3
    $region8: #{tpu_custom_call.1} parent=1 // loop_exit
      _
    %2294 = vsyncpa [#allocation3], 1
    %s2295 = scalar_lea.sflag [#allocation3], 1
    %2296 = vsyncpa %s2295, 1
    %2297 = vsyncpa [#allocation6], 1
    %2298 = vsyncpa [#allocation4], 1
    %s2299 = scalar_lea.sflag [#allocation4], 1
    %2300 = vsyncpa %s2299, 1

</llo_original>
